<compile_context>
chip_gen: v6e
topology: v6e:2x2x1
jax: 0.10.0
libtpu: 0.0.40
codegen_flags: <defaults>
</compile_context>

<pallas_src>
import functools

import jax
import jax.numpy as jnp
from jax import lax
from jax.experimental import pallas as pl
from jax.experimental.pallas import tpu as pltpu


def _bilstm_fc_kernel(H, S, B, E, O_pad,
                      emb_ref,        # [S, B, E]   embedded inputs
                      wih_ref,        # [E, 8H]     cols 0:4H fwd, 4H:8H bwd (gate order i,f,g,o)
                      b_ref,          # [1, 8H]     bias_ih + bias_hh, fwd | bwd
                      whh_f_ref,      # [H, 4H]
                      whh_b_ref,      # [H, 4H]
                      wfc_f_ref,      # [H, O_pad]  fc weight (fwd half), zero-padded lanes
                      wfc_b_ref,      # [H, O_pad]  fc weight (bwd half), zero-padded lanes
                      bfc_ref,        # [1, O_pad]
                      out_ref,        # [S*B, O_pad]
                      gin_ref,        # scratch [S, B, 8H]  precomputed input gates
                      hf_all_ref,     # scratch [S, B, H]
                      hb_all_ref):    # scratch [S, B, H]
    """Single-layer bidirectional LSTM + Linear head, everything VMEM-resident."""

    # ---- 1) hoisted input projection for BOTH directions + folded bias (one matmul) ----
    emb_flat = emb_ref[...].reshape(S * B, E)
    gin = (jnp.dot(emb_flat, wih_ref[...], preferred_element_type=jnp.float32)
           + b_ref[...])                              # [S*B, 8H]
    gin_ref[...] = gin.reshape(S, B, 8 * H)

    whh_f = whh_f_ref[...]
    whh_b = whh_b_ref[...]

    def gate_math(gates, c_prev):
        # gates: [B, 4H] (one 128-lane vreg row-set at H=32); apply the
        # nonlinearities on the full vreg, then take static gate slices.
        sg = jax.nn.sigmoid(gates)
        tg = jnp.tanh(gates)
        i = sg[:, 0 * H:1 * H]
        f = sg[:, 1 * H:2 * H]
        g = tg[:, 2 * H:3 * H]
        o = sg[:, 3 * H:4 * H]
        c = f * c_prev + i * g
        h = o * jnp.tanh(c)
        return h, c

    # ---- 2) interleaved fwd/bwd recurrence, fully unrolled (S is static) ----
    def step(t, carry):
        h_f, c_f, h_b, c_b = carry
        tb = S - 1 - t
        gin_t = gin_ref[t]                            # [B, 8H]
        gin_tb = gin_ref[tb]                          # [B, 8H]
        gates_f = gin_t[:, :4 * H] + jnp.dot(
            h_f, whh_f, preferred_element_type=jnp.float32)
        gates_b = gin_tb[:, 4 * H:] + jnp.dot(
            h_b, whh_b, preferred_element_type=jnp.float32)
        h_f, c_f = gate_math(gates_f, c_f)
        h_b, c_b = gate_math(gates_b, c_b)
        hf_all_ref[t] = h_f
        hb_all_ref[tb] = h_b
        return h_f, c_f, h_b, c_b

    zeros = jnp.zeros((B, H), jnp.float32)
    lax.fori_loop(0, S, step, (zeros, zeros, zeros, zeros), unroll=True)

    # ---- 3) batched FC head over all S*B rows, lane-dense (padded) output ----
    hf = hf_all_ref[...].reshape(S * B, H)
    hb = hb_all_ref[...].reshape(S * B, H)
    y = (jnp.dot(hf, wfc_f_ref[...], preferred_element_type=jnp.float32)
         + jnp.dot(hb, wfc_b_ref[...], preferred_element_type=jnp.float32)
         + bfc_ref[...])
    out_ref[...] = y.astype(out_ref.dtype)


def bilstm_pos_tagger(text, params, *, hidden_dim, output_dim):
    """Forward pass equivalent to BiLSTMPOSTagger (eval mode: dropout is identity)."""
    emb_w = params["embedding"]                       # [V, E]
    embedded = emb_w[text]                            # [S, B, E]
    S, B, E = embedded.shape
    H, O = hidden_dim, output_dim
    O_pad = max(128, ((O + 127) // 128) * 128)        # lane-dense output width

    # One-time param repacking (tiny, outside the hot path).
    wih = jnp.concatenate([params["wih_f"], params["wih_b"]], axis=1)   # [E, 8H]
    b = jnp.concatenate([params["b_f"], params["b_b"]], axis=1)         # [1, 8H]
    wfc_f = jnp.zeros((H, O_pad), jnp.float32).at[:, :O].set(params["wfc_f"])
    wfc_b = jnp.zeros((H, O_pad), jnp.float32).at[:, :O].set(params["wfc_b"])
    bfc = jnp.zeros((1, O_pad), jnp.float32).at[:, :O].set(params["bfc"])

    kernel = functools.partial(_bilstm_fc_kernel, H, S, B, E, O_pad)
    vmem = lambda: pl.BlockSpec(memory_space=pltpu.MemorySpace.VMEM)

    out_flat = pl.pallas_call(
        kernel,
        out_shape=jax.ShapeDtypeStruct((S * B, O_pad), jnp.float32),
        in_specs=[vmem() for _ in range(8)],
        out_specs=vmem(),
        scratch_shapes=[
            pltpu.VMEM((S, B, 8 * H), jnp.float32),   # precomputed input gates
            pltpu.VMEM((S, B, H), jnp.float32),       # forward hidden states
            pltpu.VMEM((S, B, H), jnp.float32),       # backward hidden states
        ],
    )(embedded, wih, b,
      params["whh_f"], params["whh_b"],
      wfc_f, wfc_b, bfc)

    return out_flat.reshape(S, B, O_pad)[:, :, :O]


def _reference(text, params, *, hidden_dim):
    """Pure-JAX reference matching PyTorch nn.LSTM (bidirectional, 1 layer) + Linear."""
    H = hidden_dim
    emb = params["embedding"][text]                   # [S, B, E]
    S, B, _ = emb.shape

    def run_dir(xs, wih, whh, b):
        def step(carry, x):
            h, c = carry
            gates = x @ wih + h @ whh + b             # [B, 4H]
            i, f, g, o = jnp.split(gates, 4, axis=-1)
            i, f, o = jax.nn.sigmoid(i), jax.nn.sigmoid(f), jax.nn.sigmoid(o)
            g = jnp.tanh(g)
            c = f * c + i * g
            h = o * jnp.tanh(c)
            return (h, c), h
        init = (jnp.zeros((B, H), jnp.float32), jnp.zeros((B, H), jnp.float32))
        _, hs = lax.scan(step, init, xs)
        return hs                                     # [S, B, H]

    h_f = run_dir(emb, params["wih_f"], params["whh_f"], params["b_f"][0])
    h_b = run_dir(emb[::-1], params["wih_b"], params["whh_b"], params["b_b"][0])[::-1]
    outputs = jnp.concatenate([h_f, h_b], axis=-1)                       # [S, B, 2H]
    wfc = jnp.concatenate([params["wfc_f"], params["wfc_b"]], axis=0)    # [2H, O]
    return outputs @ wfc + params["bfc"][0]


def make_params(key, vocab, emb_dim, hidden_dim, output_dim, pad_idx):
    ks = jax.random.split(key, 12)
    s = 0.1
    E, H, O = emb_dim, hidden_dim, output_dim

    emb = jax.random.normal(ks[0], (vocab, E), jnp.float32) * s
    emb = emb.at[pad_idx].set(0.0)                    # padding_idx row is zero (frozen)

    def lin(k, shape):
        return jax.random.normal(k, shape, jnp.float32) * s

    # PyTorch nn.LSTM params: weight_ih [4H, E], weight_hh [4H, H], biases [4H]
    # (gate order i, f, g, o).  Pre-transposed; bias_ih + bias_hh folded.
    params = {
        "embedding": emb,
        "wih_f": lin(ks[1], (4 * H, E)).T,
        "whh_f": lin(ks[2], (4 * H, H)).T,
        "b_f": (lin(ks[3], (4 * H,)) + lin(ks[4], (4 * H,))).reshape(1, 4 * H),
        "wih_b": lin(ks[5], (4 * H, E)).T,
        "whh_b": lin(ks[6], (4 * H, H)).T,
        "b_b": (lin(ks[7], (4 * H,)) + lin(ks[8], (4 * H,))).reshape(1, 4 * H),
    }
    fc_w = lin(ks[9], (O, 2 * H))                     # nn.Linear weight [O, 2H]
    fc_b = lin(ks[10], (O,))
    wfc = fc_w.T                                      # [2H, O]
    params["wfc_f"] = wfc[:H]
    params["wfc_b"] = wfc[H:]
    params["bfc"] = fc_b.reshape(1, O)
    return params


if __name__ == "__main__":
    # Small shapes consistent with the module:
    VOCAB, EMB, HID, OUT = 50, 32, 32, 16
    SEQ, BATCH = 8, 8
    PAD_IDX = 0

    key = jax.random.PRNGKey(0)
    k_params, k_text = jax.random.split(key)
    params = make_params(k_params, VOCAB, EMB, HID, OUT, PAD_IDX)
    text = jax.random.randint(k_text, (SEQ, BATCH), 0, VOCAB, dtype=jnp.int32)

    preds = bilstm_pos_tagger(text, params, hidden_dim=HID, output_dim=OUT)
    preds = jax.block_until_ready(preds)

    ref = _reference(text, params, hidden_dim=HID)
    assert preds.shape == (SEQ, BATCH, OUT)
    assert jnp.allclose(preds, ref, rtol=2e-5, atol=2e-5), "mismatch vs JAX reference"

    print("KERNEL_OK")
</pallas_src>

<mosaic_0001>
module attributes {stable_mosaic.version = 11 : i64} {
  func.func @_bilstm_fc_kernel(%arg0: memref<8x8x32xf32, #tpu.memory_space<vmem>>, %arg1: memref<32x256xf32, #tpu.memory_space<vmem>>, %arg2: memref<1x256xf32, #tpu.memory_space<vmem>>, %arg3: memref<32x128xf32, #tpu.memory_space<vmem>>, %arg4: memref<32x128xf32, #tpu.memory_space<vmem>>, %arg5: memref<32x128xf32, #tpu.memory_space<vmem>>, %arg6: memref<32x128xf32, #tpu.memory_space<vmem>>, %arg7: memref<1x128xf32, #tpu.memory_space<vmem>>, %arg8: memref<64x128xf32, #tpu.memory_space<vmem>>, %arg9: memref<8x8x256xf32, #tpu.memory_space<vmem>>, %arg10: memref<8x8x32xf32, #tpu.memory_space<vmem>>, %arg11: memref<8x8x32xf32, #tpu.memory_space<vmem>>) attributes {dimension_semantics = [], scalar_prefetch = 0 : i64, scratch_operands = 3 : i64, tpu.core_type = #tpu.core_type<tc>} {
    %c0 = arith.constant 0 : index
    %c0_0 = arith.constant 0 : index
    %c0_1 = arith.constant 0 : index
    %0 = vector.load %arg0[%c0, %c0_0, %c0_1] : memref<8x8x32xf32, #tpu.memory_space<vmem>>, vector<8x8x32xf32>
    %1 = vector.shape_cast %0 : vector<8x8x32xf32> to vector<64x32xf32>
    %c0_2 = arith.constant 0 : index
    %c0_3 = arith.constant 0 : index
    %2 = vector.load %arg1[%c0_2, %c0_3] : memref<32x256xf32, #tpu.memory_space<vmem>>, vector<32x256xf32>
    %cst = arith.constant dense<0.000000e+00> : vector<64x256xf32>
    %3 = tpu.matmul %1, %2, %cst {dimension_numbers = #tpu.dot_dimension_numbers<[1], [0], [0], [1], [0, 0, 1, 1], [], []>} : vector<64x32xf32>, vector<32x256xf32>, vector<64x256xf32> -> vector<64x256xf32>
    %c0_4 = arith.constant 0 : index
    %c0_5 = arith.constant 0 : index
    %4 = vector.load %arg2[%c0_4, %c0_5] : memref<1x256xf32, #tpu.memory_space<vmem>>, vector<1x256xf32>
    %5 = vector.broadcast %4 : vector<1x256xf32> to vector<64x256xf32>
    %6 = arith.addf %3, %5 : vector<64x256xf32>
    %7 = vector.shape_cast %6 : vector<64x256xf32> to vector<8x8x256xf32>
    %c0_6 = arith.constant 0 : index
    %c0_7 = arith.constant 0 : index
    %c0_8 = arith.constant 0 : index
    %8 = vector.load %arg9[%c0_6, %c0_7, %c0_8] : memref<8x8x256xf32, #tpu.memory_space<vmem>>, vector<8x8x256xf32>
    tpu.vector_store %arg9[%c0_6, %c0_7, %c0_8], %7 {strides = array<i32>} : memref<8x8x256xf32, #tpu.memory_space<vmem>>, vector<8x8x256xf32>,
    %c0_9 = arith.constant 0 : index
    %c0_10 = arith.constant 0 : index
    %9 = vector.load %arg3[%c0_9, %c0_10] : memref<32x128xf32, #tpu.memory_space<vmem>>, vector<32x128xf32>
    %c0_11 = arith.constant 0 : index
    %c0_12 = arith.constant 0 : index
    %10 = vector.load %arg4[%c0_11, %c0_12] : memref<32x128xf32, #tpu.memory_space<vmem>>, vector<32x128xf32>
    %cst_13 = arith.constant 0.000000e+00 : f32
    %11 = vector.broadcast %cst_13 : f32 to vector<8x32xf32>
    %c0_i32 = arith.constant 0 : i32
    %c7_i32 = arith.constant 7 : i32
    %12 = arith.subi %c7_i32, %c0_i32 : i32
    %13 = arith.index_cast %c0_i32 : i32 to index
    %c0_14 = arith.constant 0 : index
    %c0_15 = arith.constant 0 : index
    %14 = vector.load %arg9[%13, %c0_14, %c0_15] : memref<8x8x256xf32, #tpu.memory_space<vmem>>, vector<1x8x256xf32>
    %15 = vector.shape_cast %14 : vector<1x8x256xf32> to vector<8x256xf32>
    %16 = arith.index_cast %12 : i32 to index
    %c0_16 = arith.constant 0 : index
    %c0_17 = arith.constant 0 : index
    %17 = vector.load %arg9[%16, %c0_16, %c0_17] : memref<8x8x256xf32, #tpu.memory_space<vmem>>, vector<1x8x256xf32>
    %18 = vector.shape_cast %17 : vector<1x8x256xf32> to vector<8x256xf32>
    %19 = vector.extract_strided_slice %15 {offsets = [0, 0], sizes = [8, 128], strides = [1, 1]} : vector<8x256xf32> to vector<8x128xf32>
    %cst_18 = arith.constant dense<0.000000e+00> : vector<8x128xf32>
    %20 = tpu.matmul %11, %9, %cst_18 {dimension_numbers = #tpu.dot_dimension_numbers<[1], [0], [0], [1], [0, 0, 1, 1], [], []>} : vector<8x32xf32>, vector<32x128xf32>, vector<8x128xf32> -> vector<8x128xf32>
    %21 = arith.addf %19, %20 : vector<8x128xf32>
    %22 = vector.extract_strided_slice %18 {offsets = [0, 128], sizes = [8, 128], strides = [1, 1]} : vector<8x256xf32> to vector<8x128xf32>
    %cst_19 = arith.constant dense<0.000000e+00> : vector<8x128xf32>
    %23 = tpu.matmul %11, %10, %cst_19 {dimension_numbers = #tpu.dot_dimension_numbers<[1], [0], [0], [1], [0, 0, 1, 1], [], []>} : vector<8x32xf32>, vector<32x128xf32>, vector<8x128xf32> -> vector<8x128xf32>
    %24 = arith.addf %22, %23 : vector<8x128xf32>
    %25 = arith.negf %21 : vector<8x128xf32>
    %26 = math.exp %25 : vector<8x128xf32>
    %cst_20 = arith.constant 1.000000e+00 : f32
    %27 = vector.broadcast %cst_20 : f32 to vector<8x128xf32>
    %28 = arith.addf %27, %26 : vector<8x128xf32>
    %29 = arith.divf %27, %28 : vector<8x128xf32>
    %30 = math.tanh %21 : vector<8x128xf32>
    %31 = vector.extract_strided_slice %29 {offsets = [0, 0], sizes = [8, 32], strides = [1, 1]} : vector<8x128xf32> to vector<8x32xf32>
    %32 = vector.extract_strided_slice %29 {offsets = [0, 32], sizes = [8, 32], strides = [1, 1]} : vector<8x128xf32> to vector<8x32xf32>
    %33 = vector.extract_strided_slice %30 {offsets = [0, 64], sizes = [8, 32], strides = [1, 1]} : vector<8x128xf32> to vector<8x32xf32>
    %34 = vector.extract_strided_slice %29 {offsets = [0, 96], sizes = [8, 32], strides = [1, 1]} : vector<8x128xf32> to vector<8x32xf32>
    %35 = arith.mulf %32, %11 : vector<8x32xf32>
    %36 = arith.mulf %31, %33 : vector<8x32xf32>
    %37 = arith.addf %35, %36 : vector<8x32xf32>
    %38 = math.tanh %37 : vector<8x32xf32>
    %39 = arith.mulf %34, %38 : vector<8x32xf32>
    %40 = arith.negf %24 : vector<8x128xf32>
    %41 = math.exp %40 : vector<8x128xf32>
    %cst_21 = arith.constant 1.000000e+00 : f32
    %42 = vector.broadcast %cst_21 : f32 to vector<8x128xf32>
    %43 = arith.addf %42, %41 : vector<8x128xf32>
    %44 = arith.divf %42, %43 : vector<8x128xf32>
    %45 = math.tanh %24 : vector<8x128xf32>
    %46 = vector.extract_strided_slice %44 {offsets = [0, 0], sizes = [8, 32], strides = [1, 1]} : vector<8x128xf32> to vector<8x32xf32>
    %47 = vector.extract_strided_slice %44 {offsets = [0, 32], sizes = [8, 32], strides = [1, 1]} : vector<8x128xf32> to vector<8x32xf32>
    %48 = vector.extract_strided_slice %45 {offsets = [0, 64], sizes = [8, 32], strides = [1, 1]} : vector<8x128xf32> to vector<8x32xf32>
    %49 = vector.extract_strided_slice %44 {offsets = [0, 96], sizes = [8, 32], strides = [1, 1]} : vector<8x128xf32> to vector<8x32xf32>
    %50 = arith.mulf %47, %11 : vector<8x32xf32>
    %51 = arith.mulf %46, %48 : vector<8x32xf32>
    %52 = arith.addf %50, %51 : vector<8x32xf32>
    %53 = math.tanh %52 : vector<8x32xf32>
    %54 = arith.mulf %49, %53 : vector<8x32xf32>
    %55 = arith.index_cast %c0_i32 : i32 to index
    %c0_22 = arith.constant 0 : index
    %c0_23 = arith.constant 0 : index
    %56 = vector.load %arg10[%55, %c0_22, %c0_23] : memref<8x8x32xf32, #tpu.memory_space<vmem>>, vector<1x8x32xf32>
    %57 = vector.shape_cast %56 : vector<1x8x32xf32> to vector<8x32xf32>
    %58 = vector.shape_cast %39 : vector<8x32xf32> to vector<1x8x32xf32>
    tpu.vector_store %arg10[%55, %c0_22, %c0_23], %58 {strides = array<i32>} : memref<8x8x32xf32, #tpu.memory_space<vmem>>, vector<1x8x32xf32>,
    %59 = arith.index_cast %12 : i32 to index
    %c0_24 = arith.constant 0 : index
    %c0_25 = arith.constant 0 : index
    %60 = vector.load %arg11[%59, %c0_24, %c0_25] : memref<8x8x32xf32, #tpu.memory_space<vmem>>, vector<1x8x32xf32>
    %61 = vector.shape_cast %60 : vector<1x8x32xf32> to vector<8x32xf32>
    %62 = vector.shape_cast %54 : vector<8x32xf32> to vector<1x8x32xf32>
    tpu.vector_store %arg11[%59, %c0_24, %c0_25], %62 {strides = array<i32>} : memref<8x8x32xf32, #tpu.memory_space<vmem>>, vector<1x8x32xf32>,
    %c1_i32 = arith.constant 1 : i32
    %c7_i32_26 = arith.constant 7 : i32
    %63 = arith.subi %c7_i32_26, %c1_i32 : i32
    %64 = arith.index_cast %c1_i32 : i32 to index
    %c0_27 = arith.constant 0 : index
    %c0_28 = arith.constant 0 : index
    %65 = vector.load %arg9[%64, %c0_27, %c0_28] : memref<8x8x256xf32, #tpu.memory_space<vmem>>, vector<1x8x256xf32>
    %66 = vector.shape_cast %65 : vector<1x8x256xf32> to vector<8x256xf32>
    %67 = arith.index_cast %63 : i32 to index
    %c0_29 = arith.constant 0 : index
    %c0_30 = arith.constant 0 : index
    %68 = vector.load %arg9[%67, %c0_29, %c0_30] : memref<8x8x256xf32, #tpu.memory_space<vmem>>, vector<1x8x256xf32>
    %69 = vector.shape_cast %68 : vector<1x8x256xf32> to vector<8x256xf32>
    %70 = vector.extract_strided_slice %66 {offsets = [0, 0], sizes = [8, 128], strides = [1, 1]} : vector<8x256xf32> to vector<8x128xf32>
    %cst_31 = arith.constant dense<0.000000e+00> : vector<8x128xf32>
    %71 = tpu.matmul %39, %9, %cst_31 {dimension_numbers = #tpu.dot_dimension_numbers<[1], [0], [0], [1], [0, 0, 1, 1], [], []>} : vector<8x32xf32>, vector<32x128xf32>, vector<8x128xf32> -> vector<8x128xf32>
    %72 = arith.addf %70, %71 : vector<8x128xf32>
    %73 = vector.extract_strided_slice %69 {offsets = [0, 128], sizes = [8, 128], strides = [1, 1]} : vector<8x256xf32> to vector<8x128xf32>
    %cst_32 = arith.constant dense<0.000000e+00> : vector<8x128xf32>
    %74 = tpu.matmul %54, %10, %cst_32 {dimension_numbers = #tpu.dot_dimension_numbers<[1], [0], [0], [1], [0, 0, 1, 1], [], []>} : vector<8x32xf32>, vector<32x128xf32>, vector<8x128xf32> -> vector<8x128xf32>
    %75 = arith.addf %73, %74 : vector<8x128xf32>
    %76 = arith.negf %72 : vector<8x128xf32>
    %77 = math.exp %76 : vector<8x128xf32>
    %cst_33 = arith.constant 1.000000e+00 : f32
    %78 = vector.broadcast %cst_33 : f32 to vector<8x128xf32>
    %79 = arith.addf %78, %77 : vector<8x128xf32>
    %80 = arith.divf %78, %79 : vector<8x128xf32>
    %81 = math.tanh %72 : vector<8x128xf32>
    %82 = vector.extract_strided_slice %80 {offsets = [0, 0], sizes = [8, 32], strides = [1, 1]} : vector<8x128xf32> to vector<8x32xf32>
    %83 = vector.extract_strided_slice %80 {offsets = [0, 32], sizes = [8, 32], strides = [1, 1]} : vector<8x128xf32> to vector<8x32xf32>
    %84 = vector.extract_strided_slice %81 {offsets = [0, 64], sizes = [8, 32], strides = [1, 1]} : vector<8x128xf32> to vector<8x32xf32>
    %85 = vector.extract_strided_slice %80 {offsets = [0, 96], sizes = [8, 32], strides = [1, 1]} : vector<8x128xf32> to vector<8x32xf32>
    %86 = arith.mulf %83, %37 : vector<8x32xf32>
    %87 = arith.mulf %82, %84 : vector<8x32xf32>
    %88 = arith.addf %86, %87 : vector<8x32xf32>
    %89 = math.tanh %88 : vector<8x32xf32>
    %90 = arith.mulf %85, %89 : vector<8x32xf32>
    %91 = arith.negf %75 : vector<8x128xf32>
    %92 = math.exp %91 : vector<8x128xf32>
    %cst_34 = arith.constant 1.000000e+00 : f32
    %93 = vector.broadcast %cst_34 : f32 to vector<8x128xf32>
    %94 = arith.addf %93, %92 : vector<8x128xf32>
    %95 = arith.divf %93, %94 : vector<8x128xf32>
    %96 = math.tanh %75 : vector<8x128xf32>
    %97 = vector.extract_strided_slice %95 {offsets = [0, 0], sizes = [8, 32], strides = [1, 1]} : vector<8x128xf32> to vector<8x32xf32>
    %98 = vector.extract_strided_slice %95 {offsets = [0, 32], sizes = [8, 32], strides = [1, 1]} : vector<8x128xf32> to vector<8x32xf32>
    %99 = vector.extract_strided_slice %96 {offsets = [0, 64], sizes = [8, 32], strides = [1, 1]} : vector<8x128xf32> to vector<8x32xf32>
    %100 = vector.extract_strided_slice %95 {offsets = [0, 96], sizes = [8, 32], strides = [1, 1]} : vector<8x128xf32> to vector<8x32xf32>
    %101 = arith.mulf %98, %52 : vector<8x32xf32>
    %102 = arith.mulf %97, %99 : vector<8x32xf32>
    %103 = arith.addf %101, %102 : vector<8x32xf32>
    %104 = math.tanh %103 : vector<8x32xf32>
    %105 = arith.mulf %100, %104 : vector<8x32xf32>
    %106 = arith.index_cast %c1_i32 : i32 to index
    %c0_35 = arith.constant 0 : index
    %c0_36 = arith.constant 0 : index
    %107 = vector.load %arg10[%106, %c0_35, %c0_36] : memref<8x8x32xf32, #tpu.memory_space<vmem>>, vector<1x8x32xf32>
    %108 = vector.shape_cast %107 : vector<1x8x32xf32> to vector<8x32xf32>
    %109 = vector.shape_cast %90 : vector<8x32xf32> to vector<1x8x32xf32>
    tpu.vector_store %arg10[%106, %c0_35, %c0_36], %109 {strides = array<i32>} : memref<8x8x32xf32, #tpu.memory_space<vmem>>, vector<1x8x32xf32>,
    %110 = arith.index_cast %63 : i32 to index
    %c0_37 = arith.constant 0 : index
    %c0_38 = arith.constant 0 : index
    %111 = vector.load %arg11[%110, %c0_37, %c0_38] : memref<8x8x32xf32, #tpu.memory_space<vmem>>, vector<1x8x32xf32>
    %112 = vector.shape_cast %111 : vector<1x8x32xf32> to vector<8x32xf32>
    %113 = vector.shape_cast %105 : vector<8x32xf32> to vector<1x8x32xf32>
    tpu.vector_store %arg11[%110, %c0_37, %c0_38], %113 {strides = array<i32>} : memref<8x8x32xf32, #tpu.memory_space<vmem>>, vector<1x8x32xf32>,
    %c2_i32 = arith.constant 2 : i32
    %c7_i32_39 = arith.constant 7 : i32
    %114 = arith.subi %c7_i32_39, %c2_i32 : i32
    %115 = arith.index_cast %c2_i32 : i32 to index
    %c0_40 = arith.constant 0 : index
    %c0_41 = arith.constant 0 : index
    %116 = vector.load %arg9[%115, %c0_40, %c0_41] : memref<8x8x256xf32, #tpu.memory_space<vmem>>, vector<1x8x256xf32>
    %117 = vector.shape_cast %116 : vector<1x8x256xf32> to vector<8x256xf32>
    %118 = arith.index_cast %114 : i32 to index
    %c0_42 = arith.constant 0 : index
    %c0_43 = arith.constant 0 : index
    %119 = vector.load %arg9[%118, %c0_42, %c0_43] : memref<8x8x256xf32, #tpu.memory_space<vmem>>, vector<1x8x256xf32>
    %120 = vector.shape_cast %119 : vector<1x8x256xf32> to vector<8x256xf32>
    %121 = vector.extract_strided_slice %117 {offsets = [0, 0], sizes = [8, 128], strides = [1, 1]} : vector<8x256xf32> to vector<8x128xf32>
    %cst_44 = arith.constant dense<0.000000e+00> : vector<8x128xf32>
    %122 = tpu.matmul %90, %9, %cst_44 {dimension_numbers = #tpu.dot_dimension_numbers<[1], [0], [0], [1], [0, 0, 1, 1], [], []>} : vector<8x32xf32>, vector<32x128xf32>, vector<8x128xf32> -> vector<8x128xf32>
    %123 = arith.addf %121, %122 : vector<8x128xf32>
    %124 = vector.extract_strided_slice %120 {offsets = [0, 128], sizes = [8, 128], strides = [1, 1]} : vector<8x256xf32> to vector<8x128xf32>
    %cst_45 = arith.constant dense<0.000000e+00> : vector<8x128xf32>
    %125 = tpu.matmul %105, %10, %cst_45 {dimension_numbers = #tpu.dot_dimension_numbers<[1], [0], [0], [1], [0, 0, 1, 1], [], []>} : vector<8x32xf32>, vector<32x128xf32>, vector<8x128xf32> -> vector<8x128xf32>
    %126 = arith.addf %124, %125 : vector<8x128xf32>
    %127 = arith.negf %123 : vector<8x128xf32>
    %128 = math.exp %127 : vector<8x128xf32>
    %cst_46 = arith.constant 1.000000e+00 : f32
    %129 = vector.broadcast %cst_46 : f32 to vector<8x128xf32>
    %130 = arith.addf %129, %128 : vector<8x128xf32>
    %131 = arith.divf %129, %130 : vector<8x128xf32>
    %132 = math.tanh %123 : vector<8x128xf32>
    %133 = vector.extract_strided_slice %131 {offsets = [0, 0], sizes = [8, 32], strides = [1, 1]} : vector<8x128xf32> to vector<8x32xf32>
    %134 = vector.extract_strided_slice %131 {offsets = [0, 32], sizes = [8, 32], strides = [1, 1]} : vector<8x128xf32> to vector<8x32xf32>
    %135 = vector.extract_strided_slice %132 {offsets = [0, 64], sizes = [8, 32], strides = [1, 1]} : vector<8x128xf32> to vector<8x32xf32>
    %136 = vector.extract_strided_slice %131 {offsets = [0, 96], sizes = [8, 32], strides = [1, 1]} : vector<8x128xf32> to vector<8x32xf32>
    %137 = arith.mulf %134, %88 : vector<8x32xf32>
    %138 = arith.mulf %133, %135 : vector<8x32xf32>
    %139 = arith.addf %137, %138 : vector<8x32xf32>
    %140 = math.tanh %139 : vector<8x32xf32>
    %141 = arith.mulf %136, %140 : vector<8x32xf32>
    %142 = arith.negf %126 : vector<8x128xf32>
    %143 = math.exp %142 : vector<8x128xf32>
    %cst_47 = arith.constant 1.000000e+00 : f32
    %144 = vector.broadcast %cst_47 : f32 to vector<8x128xf32>
    %145 = arith.addf %144, %143 : vector<8x128xf32>
    %146 = arith.divf %144, %145 : vector<8x128xf32>
    %147 = math.tanh %126 : vector<8x128xf32>
    %148 = vector.extract_strided_slice %146 {offsets = [0, 0], sizes = [8, 32], strides = [1, 1]} : vector<8x128xf32> to vector<8x32xf32>
    %149 = vector.extract_strided_slice %146 {offsets = [0, 32], sizes = [8, 32], strides = [1, 1]} : vector<8x128xf32> to vector<8x32xf32>
    %150 = vector.extract_strided_slice %147 {offsets = [0, 64], sizes = [8, 32], strides = [1, 1]} : vector<8x128xf32> to vector<8x32xf32>
    %151 = vector.extract_strided_slice %146 {offsets = [0, 96], sizes = [8, 32], strides = [1, 1]} : vector<8x128xf32> to vector<8x32xf32>
    %152 = arith.mulf %149, %103 : vector<8x32xf32>
    %153 = arith.mulf %148, %150 : vector<8x32xf32>
    %154 = arith.addf %152, %153 : vector<8x32xf32>
    %155 = math.tanh %154 : vector<8x32xf32>
    %156 = arith.mulf %151, %155 : vector<8x32xf32>
    %157 = arith.index_cast %c2_i32 : i32 to index
    %c0_48 = arith.constant 0 : index
    %c0_49 = arith.constant 0 : index
    %158 = vector.load %arg10[%157, %c0_48, %c0_49] : memref<8x8x32xf32, #tpu.memory_space<vmem>>, vector<1x8x32xf32>
    %159 = vector.shape_cast %158 : vector<1x8x32xf32> to vector<8x32xf32>
    %160 = vector.shape_cast %141 : vector<8x32xf32> to vector<1x8x32xf32>
    tpu.vector_store %arg10[%157, %c0_48, %c0_49], %160 {strides = array<i32>} : memref<8x8x32xf32, #tpu.memory_space<vmem>>, vector<1x8x32xf32>,
    %161 = arith.index_cast %114 : i32 to index
    %c0_50 = arith.constant 0 : index
    %c0_51 = arith.constant 0 : index
    %162 = vector.load %arg11[%161, %c0_50, %c0_51] : memref<8x8x32xf32, #tpu.memory_space<vmem>>, vector<1x8x32xf32>
    %163 = vector.shape_cast %162 : vector<1x8x32xf32> to vector<8x32xf32>
    %164 = vector.shape_cast %156 : vector<8x32xf32> to vector<1x8x32xf32>
    tpu.vector_store %arg11[%161, %c0_50, %c0_51], %164 {strides = array<i32>} : memref<8x8x32xf32, #tpu.memory_space<vmem>>, vector<1x8x32xf32>,
    %c3_i32 = arith.constant 3 : i32
    %c7_i32_52 = arith.constant 7 : i32
    %165 = arith.subi %c7_i32_52, %c3_i32 : i32
    %166 = arith.index_cast %c3_i32 : i32 to index
    %c0_53 = arith.constant 0 : index
    %c0_54 = arith.constant 0 : index
    %167 = vector.load %arg9[%166, %c0_53, %c0_54] : memref<8x8x256xf32, #tpu.memory_space<vmem>>, vector<1x8x256xf32>
    %168 = vector.shape_cast %167 : vector<1x8x256xf32> to vector<8x256xf32>
    %169 = arith.index_cast %165 : i32 to index
    %c0_55 = arith.constant 0 : index
    %c0_56 = arith.constant 0 : index
    %170 = vector.load %arg9[%169, %c0_55, %c0_56] : memref<8x8x256xf32, #tpu.memory_space<vmem>>, vector<1x8x256xf32>
    %171 = vector.shape_cast %170 : vector<1x8x256xf32> to vector<8x256xf32>
    %172 = vector.extract_strided_slice %168 {offsets = [0, 0], sizes = [8, 128], strides = [1, 1]} : vector<8x256xf32> to vector<8x128xf32>
    %cst_57 = arith.constant dense<0.000000e+00> : vector<8x128xf32>
    %173 = tpu.matmul %141, %9, %cst_57 {dimension_numbers = #tpu.dot_dimension_numbers<[1], [0], [0], [1], [0, 0, 1, 1], [], []>} : vector<8x32xf32>, vector<32x128xf32>, vector<8x128xf32> -> vector<8x128xf32>
    %174 = arith.addf %172, %173 : vector<8x128xf32>
    %175 = vector.extract_strided_slice %171 {offsets = [0, 128], sizes = [8, 128], strides = [1, 1]} : vector<8x256xf32> to vector<8x128xf32>
    %cst_58 = arith.constant dense<0.000000e+00> : vector<8x128xf32>
    %176 = tpu.matmul %156, %10, %cst_58 {dimension_numbers = #tpu.dot_dimension_numbers<[1], [0], [0], [1], [0, 0, 1, 1], [], []>} : vector<8x32xf32>, vector<32x128xf32>, vector<8x128xf32> -> vector<8x128xf32>
    %177 = arith.addf %175, %176 : vector<8x128xf32>
    %178 = arith.negf %174 : vector<8x128xf32>
    %179 = math.exp %178 : vector<8x128xf32>
    %cst_59 = arith.constant 1.000000e+00 : f32
    %180 = vector.broadcast %cst_59 : f32 to vector<8x128xf32>
    %181 = arith.addf %180, %179 : vector<8x128xf32>
    %182 = arith.divf %180, %181 : vector<8x128xf32>
    %183 = math.tanh %174 : vector<8x128xf32>
    %184 = vector.extract_strided_slice %182 {offsets = [0, 0], sizes = [8, 32], strides = [1, 1]} : vector<8x128xf32> to vector<8x32xf32>
    %185 = vector.extract_strided_slice %182 {offsets = [0, 32], sizes = [8, 32], strides = [1, 1]} : vector<8x128xf32> to vector<8x32xf32>
    %186 = vector.extract_strided_slice %183 {offsets = [0, 64], sizes = [8, 32], strides = [1, 1]} : vector<8x128xf32> to vector<8x32xf32>
    %187 = vector.extract_strided_slice %182 {offsets = [0, 96], sizes = [8, 32], strides = [1, 1]} : vector<8x128xf32> to vector<8x32xf32>
    %188 = arith.mulf %185, %139 : vector<8x32xf32>
    %189 = arith.mulf %184, %186 : vector<8x32xf32>
    %190 = arith.addf %188, %189 : vector<8x32xf32>
    %191 = math.tanh %190 : vector<8x32xf32>
    %192 = arith.mulf %187, %191 : vector<8x32xf32>
    %193 = arith.negf %177 : vector<8x128xf32>
    %194 = math.exp %193 : vector<8x128xf32>
    %cst_60 = arith.constant 1.000000e+00 : f32
    %195 = vector.broadcast %cst_60 : f32 to vector<8x128xf32>
    %196 = arith.addf %195, %194 : vector<8x128xf32>
    %197 = arith.divf %195, %196 : vector<8x128xf32>
    %198 = math.tanh %177 : vector<8x128xf32>
    %199 = vector.extract_strided_slice %197 {offsets = [0, 0], sizes = [8, 32], strides = [1, 1]} : vector<8x128xf32> to vector<8x32xf32>
    %200 = vector.extract_strided_slice %197 {offsets = [0, 32], sizes = [8, 32], strides = [1, 1]} : vector<8x128xf32> to vector<8x32xf32>
    %201 = vector.extract_strided_slice %198 {offsets = [0, 64], sizes = [8, 32], strides = [1, 1]} : vector<8x128xf32> to vector<8x32xf32>
    %202 = vector.extract_strided_slice %197 {offsets = [0, 96], sizes = [8, 32], strides = [1, 1]} : vector<8x128xf32> to vector<8x32xf32>
    %203 = arith.mulf %200, %154 : vector<8x32xf32>
    %204 = arith.mulf %199, %201 : vector<8x32xf32>
    %205 = arith.addf %203, %204 : vector<8x32xf32>
    %206 = math.tanh %205 : vector<8x32xf32>
    %207 = arith.mulf %202, %206 : vector<8x32xf32>
    %208 = arith.index_cast %c3_i32 : i32 to index
    %c0_61 = arith.constant 0 : index
    %c0_62 = arith.constant 0 : index
    %209 = vector.load %arg10[%208, %c0_61, %c0_62] : memref<8x8x32xf32, #tpu.memory_space<vmem>>, vector<1x8x32xf32>
    %210 = vector.shape_cast %209 : vector<1x8x32xf32> to vector<8x32xf32>
    %211 = vector.shape_cast %192 : vector<8x32xf32> to vector<1x8x32xf32>
    tpu.vector_store %arg10[%208, %c0_61, %c0_62], %211 {strides = array<i32>} : memref<8x8x32xf32, #tpu.memory_space<vmem>>, vector<1x8x32xf32>,
    %212 = arith.index_cast %165 : i32 to index
    %c0_63 = arith.constant 0 : index
    %c0_64 = arith.constant 0 : index
    %213 = vector.load %arg11[%212, %c0_63, %c0_64] : memref<8x8x32xf32, #tpu.memory_space<vmem>>, vector<1x8x32xf32>
    %214 = vector.shape_cast %213 : vector<1x8x32xf32> to vector<8x32xf32>
    %215 = vector.shape_cast %207 : vector<8x32xf32> to vector<1x8x32xf32>
    tpu.vector_store %arg11[%212, %c0_63, %c0_64], %215 {strides = array<i32>} : memref<8x8x32xf32, #tpu.memory_space<vmem>>, vector<1x8x32xf32>,
    %c4_i32 = arith.constant 4 : i32
    %c7_i32_65 = arith.constant 7 : i32
    %216 = arith.subi %c7_i32_65, %c4_i32 : i32
    %217 = arith.index_cast %c4_i32 : i32 to index
    %c0_66 = arith.constant 0 : index
    %c0_67 = arith.constant 0 : index
    %218 = vector.load %arg9[%217, %c0_66, %c0_67] : memref<8x8x256xf32, #tpu.memory_space<vmem>>, vector<1x8x256xf32>
    %219 = vector.shape_cast %218 : vector<1x8x256xf32> to vector<8x256xf32>
    %220 = arith.index_cast %216 : i32 to index
    %c0_68 = arith.constant 0 : index
    %c0_69 = arith.constant 0 : index
    %221 = vector.load %arg9[%220, %c0_68, %c0_69] : memref<8x8x256xf32, #tpu.memory_space<vmem>>, vector<1x8x256xf32>
    %222 = vector.shape_cast %221 : vector<1x8x256xf32> to vector<8x256xf32>
    %223 = vector.extract_strided_slice %219 {offsets = [0, 0], sizes = [8, 128], strides = [1, 1]} : vector<8x256xf32> to vector<8x128xf32>
    %cst_70 = arith.constant dense<0.000000e+00> : vector<8x128xf32>
    %224 = tpu.matmul %192, %9, %cst_70 {dimension_numbers = #tpu.dot_dimension_numbers<[1], [0], [0], [1], [0, 0, 1, 1], [], []>} : vector<8x32xf32>, vector<32x128xf32>, vector<8x128xf32> -> vector<8x128xf32>
    %225 = arith.addf %223, %224 : vector<8x128xf32>
    %226 = vector.extract_strided_slice %222 {offsets = [0, 128], sizes = [8, 128], strides = [1, 1]} : vector<8x256xf32> to vector<8x128xf32>
    %cst_71 = arith.constant dense<0.000000e+00> : vector<8x128xf32>
    %227 = tpu.matmul %207, %10, %cst_71 {dimension_numbers = #tpu.dot_dimension_numbers<[1], [0], [0], [1], [0, 0, 1, 1], [], []>} : vector<8x32xf32>, vector<32x128xf32>, vector<8x128xf32> -> vector<8x128xf32>
    %228 = arith.addf %226, %227 : vector<8x128xf32>
    %229 = arith.negf %225 : vector<8x128xf32>
    %230 = math.exp %229 : vector<8x128xf32>
    %cst_72 = arith.constant 1.000000e+00 : f32
    %231 = vector.broadcast %cst_72 : f32 to vector<8x128xf32>
    %232 = arith.addf %231, %230 : vector<8x128xf32>
    %233 = arith.divf %231, %232 : vector<8x128xf32>
    %234 = math.tanh %225 : vector<8x128xf32>
    %235 = vector.extract_strided_slice %233 {offsets = [0, 0], sizes = [8, 32], strides = [1, 1]} : vector<8x128xf32> to vector<8x32xf32>
    %236 = vector.extract_strided_slice %233 {offsets = [0, 32], sizes = [8, 32], strides = [1, 1]} : vector<8x128xf32> to vector<8x32xf32>
    %237 = vector.extract_strided_slice %234 {offsets = [0, 64], sizes = [8, 32], strides = [1, 1]} : vector<8x128xf32> to vector<8x32xf32>
    %238 = vector.extract_strided_slice %233 {offsets = [0, 96], sizes = [8, 32], strides = [1, 1]} : vector<8x128xf32> to vector<8x32xf32>
    %239 = arith.mulf %236, %190 : vector<8x32xf32>
    %240 = arith.mulf %235, %237 : vector<8x32xf32>
    %241 = arith.addf %239, %240 : vector<8x32xf32>
    %242 = math.tanh %241 : vector<8x32xf32>
    %243 = arith.mulf %238, %242 : vector<8x32xf32>
    %244 = arith.negf %228 : vector<8x128xf32>
    %245 = math.exp %244 : vector<8x128xf32>
    %cst_73 = arith.constant 1.000000e+00 : f32
    %246 = vector.broadcast %cst_73 : f32 to vector<8x128xf32>
    %247 = arith.addf %246, %245 : vector<8x128xf32>
    %248 = arith.divf %246, %247 : vector<8x128xf32>
    %249 = math.tanh %228 : vector<8x128xf32>
    %250 = vector.extract_strided_slice %248 {offsets = [0, 0], sizes = [8, 32], strides = [1, 1]} : vector<8x128xf32> to vector<8x32xf32>
    %251 = vector.extract_strided_slice %248 {offsets = [0, 32], sizes = [8, 32], strides = [1, 1]} : vector<8x128xf32> to vector<8x32xf32>
    %252 = vector.extract_strided_slice %249 {offsets = [0, 64], sizes = [8, 32], strides = [1, 1]} : vector<8x128xf32> to vector<8x32xf32>
    %253 = vector.extract_strided_slice %248 {offsets = [0, 96], sizes = [8, 32], strides = [1, 1]} : vector<8x128xf32> to vector<8x32xf32>
    %254 = arith.mulf %251, %205 : vector<8x32xf32>
    %255 = arith.mulf %250, %252 : vector<8x32xf32>
    %256 = arith.addf %254, %255 : vector<8x32xf32>
    %257 = math.tanh %256 : vector<8x32xf32>
    %258 = arith.mulf %253, %257 : vector<8x32xf32>
    %259 = arith.index_cast %c4_i32 : i32 to index
    %c0_74 = arith.constant 0 : index
    %c0_75 = arith.constant 0 : index
    %260 = vector.load %arg10[%259, %c0_74, %c0_75] : memref<8x8x32xf32, #tpu.memory_space<vmem>>, vector<1x8x32xf32>
    %261 = vector.shape_cast %260 : vector<1x8x32xf32> to vector<8x32xf32>
    %262 = vector.shape_cast %243 : vector<8x32xf32> to vector<1x8x32xf32>
    tpu.vector_store %arg10[%259, %c0_74, %c0_75], %262 {strides = array<i32>} : memref<8x8x32xf32, #tpu.memory_space<vmem>>, vector<1x8x32xf32>,
    %263 = arith.index_cast %216 : i32 to index
    %c0_76 = arith.constant 0 : index
    %c0_77 = arith.constant 0 : index
    %264 = vector.load %arg11[%263, %c0_76, %c0_77] : memref<8x8x32xf32, #tpu.memory_space<vmem>>, vector<1x8x32xf32>
    %265 = vector.shape_cast %264 : vector<1x8x32xf32> to vector<8x32xf32>
    %266 = vector.shape_cast %258 : vector<8x32xf32> to vector<1x8x32xf32>
    tpu.vector_store %arg11[%263, %c0_76, %c0_77], %266 {strides = array<i32>} : memref<8x8x32xf32, #tpu.memory_space<vmem>>, vector<1x8x32xf32>,
    %c5_i32 = arith.constant 5 : i32
    %c7_i32_78 = arith.constant 7 : i32
    %267 = arith.subi %c7_i32_78, %c5_i32 : i32
    %268 = arith.index_cast %c5_i32 : i32 to index
    %c0_79 = arith.constant 0 : index
    %c0_80 = arith.constant 0 : index
    %269 = vector.load %arg9[%268, %c0_79, %c0_80] : memref<8x8x256xf32, #tpu.memory_space<vmem>>, vector<1x8x256xf32>
    %270 = vector.shape_cast %269 : vector<1x8x256xf32> to vector<8x256xf32>
    %271 = arith.index_cast %267 : i32 to index
    %c0_81 = arith.constant 0 : index
    %c0_82 = arith.constant 0 : index
    %272 = vector.load %arg9[%271, %c0_81, %c0_82] : memref<8x8x256xf32, #tpu.memory_space<vmem>>, vector<1x8x256xf32>
    %273 = vector.shape_cast %272 : vector<1x8x256xf32> to vector<8x256xf32>
    %274 = vector.extract_strided_slice %270 {offsets = [0, 0], sizes = [8, 128], strides = [1, 1]} : vector<8x256xf32> to vector<8x128xf32>
    %cst_83 = arith.constant dense<0.000000e+00> : vector<8x128xf32>
    %275 = tpu.matmul %243, %9, %cst_83 {dimension_numbers = #tpu.dot_dimension_numbers<[1], [0], [0], [1], [0, 0, 1, 1], [], []>} : vector<8x32xf32>, vector<32x128xf32>, vector<8x128xf32> -> vector<8x128xf32>
    %276 = arith.addf %274, %275 : vector<8x128xf32>
    %277 = vector.extract_strided_slice %273 {offsets = [0, 128], sizes = [8, 128], strides = [1, 1]} : vector<8x256xf32> to vector<8x128xf32>
    %cst_84 = arith.constant dense<0.000000e+00> : vector<8x128xf32>
    %278 = tpu.matmul %258, %10, %cst_84 {dimension_numbers = #tpu.dot_dimension_numbers<[1], [0], [0], [1], [0, 0, 1, 1], [], []>} : vector<8x32xf32>, vector<32x128xf32>, vector<8x128xf32> -> vector<8x128xf32>
    %279 = arith.addf %277, %278 : vector<8x128xf32>
    %280 = arith.negf %276 : vector<8x128xf32>
    %281 = math.exp %280 : vector<8x128xf32>
    %cst_85 = arith.constant 1.000000e+00 : f32
    %282 = vector.broadcast %cst_85 : f32 to vector<8x128xf32>
    %283 = arith.addf %282, %281 : vector<8x128xf32>
    %284 = arith.divf %282, %283 : vector<8x128xf32>
    %285 = math.tanh %276 : vector<8x128xf32>
    %286 = vector.extract_strided_slice %284 {offsets = [0, 0], sizes = [8, 32], strides = [1, 1]} : vector<8x128xf32> to vector<8x32xf32>
    %287 = vector.extract_strided_slice %284 {offsets = [0, 32], sizes = [8, 32], strides = [1, 1]} : vector<8x128xf32> to vector<8x32xf32>
    %288 = vector.extract_strided_slice %285 {offsets = [0, 64], sizes = [8, 32], strides = [1, 1]} : vector<8x128xf32> to vector<8x32xf32>
    %289 = vector.extract_strided_slice %284 {offsets = [0, 96], sizes = [8, 32], strides = [1, 1]} : vector<8x128xf32> to vector<8x32xf32>
    %290 = arith.mulf %287, %241 : vector<8x32xf32>
    %291 = arith.mulf %286, %288 : vector<8x32xf32>
    %292 = arith.addf %290, %291 : vector<8x32xf32>
    %293 = math.tanh %292 : vector<8x32xf32>
    %294 = arith.mulf %289, %293 : vector<8x32xf32>
    %295 = arith.negf %279 : vector<8x128xf32>
    %296 = math.exp %295 : vector<8x128xf32>
    %cst_86 = arith.constant 1.000000e+00 : f32
    %297 = vector.broadcast %cst_86 : f32 to vector<8x128xf32>
    %298 = arith.addf %297, %296 : vector<8x128xf32>
    %299 = arith.divf %297, %298 : vector<8x128xf32>
    %300 = math.tanh %279 : vector<8x128xf32>
    %301 = vector.extract_strided_slice %299 {offsets = [0, 0], sizes = [8, 32], strides = [1, 1]} : vector<8x128xf32> to vector<8x32xf32>
    %302 = vector.extract_strided_slice %299 {offsets = [0, 32], sizes = [8, 32], strides = [1, 1]} : vector<8x128xf32> to vector<8x32xf32>
    %303 = vector.extract_strided_slice %300 {offsets = [0, 64], sizes = [8, 32], strides = [1, 1]} : vector<8x128xf32> to vector<8x32xf32>
    %304 = vector.extract_strided_slice %299 {offsets = [0, 96], sizes = [8, 32], strides = [1, 1]} : vector<8x128xf32> to vector<8x32xf32>
    %305 = arith.mulf %302, %256 : vector<8x32xf32>
    %306 = arith.mulf %301, %303 : vector<8x32xf32>
    %307 = arith.addf %305, %306 : vector<8x32xf32>
    %308 = math.tanh %307 : vector<8x32xf32>
    %309 = arith.mulf %304, %308 : vector<8x32xf32>
    %310 = arith.index_cast %c5_i32 : i32 to index
    %c0_87 = arith.constant 0 : index
    %c0_88 = arith.constant 0 : index
    %311 = vector.load %arg10[%310, %c0_87, %c0_88] : memref<8x8x32xf32, #tpu.memory_space<vmem>>, vector<1x8x32xf32>
    %312 = vector.shape_cast %311 : vector<1x8x32xf32> to vector<8x32xf32>
    %313 = vector.shape_cast %294 : vector<8x32xf32> to vector<1x8x32xf32>
    tpu.vector_store %arg10[%310, %c0_87, %c0_88], %313 {strides = array<i32>} : memref<8x8x32xf32, #tpu.memory_space<vmem>>, vector<1x8x32xf32>,
    %314 = arith.index_cast %267 : i32 to index
    %c0_89 = arith.constant 0 : index
    %c0_90 = arith.constant 0 : index
    %315 = vector.load %arg11[%314, %c0_89, %c0_90] : memref<8x8x32xf32, #tpu.memory_space<vmem>>, vector<1x8x32xf32>
    %316 = vector.shape_cast %315 : vector<1x8x32xf32> to vector<8x32xf32>
    %317 = vector.shape_cast %309 : vector<8x32xf32> to vector<1x8x32xf32>
    tpu.vector_store %arg11[%314, %c0_89, %c0_90], %317 {strides = array<i32>} : memref<8x8x32xf32, #tpu.memory_space<vmem>>, vector<1x8x32xf32>,
    %c6_i32 = arith.constant 6 : i32
    %c7_i32_91 = arith.constant 7 : i32
    %318 = arith.subi %c7_i32_91, %c6_i32 : i32
    %319 = arith.index_cast %c6_i32 : i32 to index
    %c0_92 = arith.constant 0 : index
    %c0_93 = arith.constant 0 : index
    %320 = vector.load %arg9[%319, %c0_92, %c0_93] : memref<8x8x256xf32, #tpu.memory_space<vmem>>, vector<1x8x256xf32>
    %321 = vector.shape_cast %320 : vector<1x8x256xf32> to vector<8x256xf32>
    %322 = arith.index_cast %318 : i32 to index
    %c0_94 = arith.constant 0 : index
    %c0_95 = arith.constant 0 : index
    %323 = vector.load %arg9[%322, %c0_94, %c0_95] : memref<8x8x256xf32, #tpu.memory_space<vmem>>, vector<1x8x256xf32>
    %324 = vector.shape_cast %323 : vector<1x8x256xf32> to vector<8x256xf32>
    %325 = vector.extract_strided_slice %321 {offsets = [0, 0], sizes = [8, 128], strides = [1, 1]} : vector<8x256xf32> to vector<8x128xf32>
    %cst_96 = arith.constant dense<0.000000e+00> : vector<8x128xf32>
    %326 = tpu.matmul %294, %9, %cst_96 {dimension_numbers = #tpu.dot_dimension_numbers<[1], [0], [0], [1], [0, 0, 1, 1], [], []>} : vector<8x32xf32>, vector<32x128xf32>, vector<8x128xf32> -> vector<8x128xf32>
    %327 = arith.addf %325, %326 : vector<8x128xf32>
    %328 = vector.extract_strided_slice %324 {offsets = [0, 128], sizes = [8, 128], strides = [1, 1]} : vector<8x256xf32> to vector<8x128xf32>
    %cst_97 = arith.constant dense<0.000000e+00> : vector<8x128xf32>
    %329 = tpu.matmul %309, %10, %cst_97 {dimension_numbers = #tpu.dot_dimension_numbers<[1], [0], [0], [1], [0, 0, 1, 1], [], []>} : vector<8x32xf32>, vector<32x128xf32>, vector<8x128xf32> -> vector<8x128xf32>
    %330 = arith.addf %328, %329 : vector<8x128xf32>
    %331 = arith.negf %327 : vector<8x128xf32>
    %332 = math.exp %331 : vector<8x128xf32>
    %cst_98 = arith.constant 1.000000e+00 : f32
    %333 = vector.broadcast %cst_98 : f32 to vector<8x128xf32>
    %334 = arith.addf %333, %332 : vector<8x128xf32>
    %335 = arith.divf %333, %334 : vector<8x128xf32>
    %336 = math.tanh %327 : vector<8x128xf32>
    %337 = vector.extract_strided_slice %335 {offsets = [0, 0], sizes = [8, 32], strides = [1, 1]} : vector<8x128xf32> to vector<8x32xf32>
    %338 = vector.extract_strided_slice %335 {offsets = [0, 32], sizes = [8, 32], strides = [1, 1]} : vector<8x128xf32> to vector<8x32xf32>
    %339 = vector.extract_strided_slice %336 {offsets = [0, 64], sizes = [8, 32], strides = [1, 1]} : vector<8x128xf32> to vector<8x32xf32>
    %340 = vector.extract_strided_slice %335 {offsets = [0, 96], sizes = [8, 32], strides = [1, 1]} : vector<8x128xf32> to vector<8x32xf32>
    %341 = arith.mulf %338, %292 : vector<8x32xf32>
    %342 = arith.mulf %337, %339 : vector<8x32xf32>
    %343 = arith.addf %341, %342 : vector<8x32xf32>
    %344 = math.tanh %343 : vector<8x32xf32>
    %345 = arith.mulf %340, %344 : vector<8x32xf32>
    %346 = arith.negf %330 : vector<8x128xf32>
    %347 = math.exp %346 : vector<8x128xf32>
    %cst_99 = arith.constant 1.000000e+00 : f32
    %348 = vector.broadcast %cst_99 : f32 to vector<8x128xf32>
    %349 = arith.addf %348, %347 : vector<8x128xf32>
    %350 = arith.divf %348, %349 : vector<8x128xf32>
    %351 = math.tanh %330 : vector<8x128xf32>
    %352 = vector.extract_strided_slice %350 {offsets = [0, 0], sizes = [8, 32], strides = [1, 1]} : vector<8x128xf32> to vector<8x32xf32>
    %353 = vector.extract_strided_slice %350 {offsets = [0, 32], sizes = [8, 32], strides = [1, 1]} : vector<8x128xf32> to vector<8x32xf32>
    %354 = vector.extract_strided_slice %351 {offsets = [0, 64], sizes = [8, 32], strides = [1, 1]} : vector<8x128xf32> to vector<8x32xf32>
    %355 = vector.extract_strided_slice %350 {offsets = [0, 96], sizes = [8, 32], strides = [1, 1]} : vector<8x128xf32> to vector<8x32xf32>
    %356 = arith.mulf %353, %307 : vector<8x32xf32>
    %357 = arith.mulf %352, %354 : vector<8x32xf32>
    %358 = arith.addf %356, %357 : vector<8x32xf32>
    %359 = math.tanh %358 : vector<8x32xf32>
    %360 = arith.mulf %355, %359 : vector<8x32xf32>
    %361 = arith.index_cast %c6_i32 : i32 to index
    %c0_100 = arith.constant 0 : index
    %c0_101 = arith.constant 0 : index
    %362 = vector.load %arg10[%361, %c0_100, %c0_101] : memref<8x8x32xf32, #tpu.memory_space<vmem>>, vector<1x8x32xf32>
    %363 = vector.shape_cast %362 : vector<1x8x32xf32> to vector<8x32xf32>
    %364 = vector.shape_cast %345 : vector<8x32xf32> to vector<1x8x32xf32>
    tpu.vector_store %arg10[%361, %c0_100, %c0_101], %364 {strides = array<i32>} : memref<8x8x32xf32, #tpu.memory_space<vmem>>, vector<1x8x32xf32>,
    %365 = arith.index_cast %318 : i32 to index
    %c0_102 = arith.constant 0 : index
    %c0_103 = arith.constant 0 : index
    %366 = vector.load %arg11[%365, %c0_102, %c0_103] : memref<8x8x32xf32, #tpu.memory_space<vmem>>, vector<1x8x32xf32>
    %367 = vector.shape_cast %366 : vector<1x8x32xf32> to vector<8x32xf32>
    %368 = vector.shape_cast %360 : vector<8x32xf32> to vector<1x8x32xf32>
    tpu.vector_store %arg11[%365, %c0_102, %c0_103], %368 {strides = array<i32>} : memref<8x8x32xf32, #tpu.memory_space<vmem>>, vector<1x8x32xf32>,
    %c7_i32_104 = arith.constant 7 : i32
    %c7_i32_105 = arith.constant 7 : i32
    %369 = arith.subi %c7_i32_105, %c7_i32_104 : i32
    %370 = arith.index_cast %c7_i32_104 : i32 to index
    %c0_106 = arith.constant 0 : index
    %c0_107 = arith.constant 0 : index
    %371 = vector.load %arg9[%370, %c0_106, %c0_107] : memref<8x8x256xf32, #tpu.memory_space<vmem>>, vector<1x8x256xf32>
    %372 = vector.shape_cast %371 : vector<1x8x256xf32> to vector<8x256xf32>
    %373 = arith.index_cast %369 : i32 to index
    %c0_108 = arith.constant 0 : index
    %c0_109 = arith.constant 0 : index
    %374 = vector.load %arg9[%373, %c0_108, %c0_109] : memref<8x8x256xf32, #tpu.memory_space<vmem>>, vector<1x8x256xf32>
    %375 = vector.shape_cast %374 : vector<1x8x256xf32> to vector<8x256xf32>
    %376 = vector.extract_strided_slice %372 {offsets = [0, 0], sizes = [8, 128], strides = [1, 1]} : vector<8x256xf32> to vector<8x128xf32>
    %cst_110 = arith.constant dense<0.000000e+00> : vector<8x128xf32>
    %377 = tpu.matmul %345, %9, %cst_110 {dimension_numbers = #tpu.dot_dimension_numbers<[1], [0], [0], [1], [0, 0, 1, 1], [], []>} : vector<8x32xf32>, vector<32x128xf32>, vector<8x128xf32> -> vector<8x128xf32>
    %378 = arith.addf %376, %377 : vector<8x128xf32>
    %379 = vector.extract_strided_slice %375 {offsets = [0, 128], sizes = [8, 128], strides = [1, 1]} : vector<8x256xf32> to vector<8x128xf32>
    %cst_111 = arith.constant dense<0.000000e+00> : vector<8x128xf32>
    %380 = tpu.matmul %360, %10, %cst_111 {dimension_numbers = #tpu.dot_dimension_numbers<[1], [0], [0], [1], [0, 0, 1, 1], [], []>} : vector<8x32xf32>, vector<32x128xf32>, vector<8x128xf32> -> vector<8x128xf32>
    %381 = arith.addf %379, %380 : vector<8x128xf32>
    %382 = arith.negf %378 : vector<8x128xf32>
    %383 = math.exp %382 : vector<8x128xf32>
    %cst_112 = arith.constant 1.000000e+00 : f32
    %384 = vector.broadcast %cst_112 : f32 to vector<8x128xf32>
    %385 = arith.addf %384, %383 : vector<8x128xf32>
    %386 = arith.divf %384, %385 : vector<8x128xf32>
    %387 = math.tanh %378 : vector<8x128xf32>
    %388 = vector.extract_strided_slice %386 {offsets = [0, 0], sizes = [8, 32], strides = [1, 1]} : vector<8x128xf32> to vector<8x32xf32>
    %389 = vector.extract_strided_slice %386 {offsets = [0, 32], sizes = [8, 32], strides = [1, 1]} : vector<8x128xf32> to vector<8x32xf32>
    %390 = vector.extract_strided_slice %387 {offsets = [0, 64], sizes = [8, 32], strides = [1, 1]} : vector<8x128xf32> to vector<8x32xf32>
    %391 = vector.extract_strided_slice %386 {offsets = [0, 96], sizes = [8, 32], strides = [1, 1]} : vector<8x128xf32> to vector<8x32xf32>
    %392 = arith.mulf %389, %343 : vector<8x32xf32>
    %393 = arith.mulf %388, %390 : vector<8x32xf32>
    %394 = arith.addf %392, %393 : vector<8x32xf32>
    %395 = math.tanh %394 : vector<8x32xf32>
    %396 = arith.mulf %391, %395 : vector<8x32xf32>
    %397 = arith.negf %381 : vector<8x128xf32>
    %398 = math.exp %397 : vector<8x128xf32>
    %cst_113 = arith.constant 1.000000e+00 : f32
    %399 = vector.broadcast %cst_113 : f32 to vector<8x128xf32>
    %400 = arith.addf %399, %398 : vector<8x128xf32>
    %401 = arith.divf %399, %400 : vector<8x128xf32>
    %402 = math.tanh %381 : vector<8x128xf32>
    %403 = vector.extract_strided_slice %401 {offsets = [0, 0], sizes = [8, 32], strides = [1, 1]} : vector<8x128xf32> to vector<8x32xf32>
    %404 = vector.extract_strided_slice %401 {offsets = [0, 32], sizes = [8, 32], strides = [1, 1]} : vector<8x128xf32> to vector<8x32xf32>
    %405 = vector.extract_strided_slice %402 {offsets = [0, 64], sizes = [8, 32], strides = [1, 1]} : vector<8x128xf32> to vector<8x32xf32>
    %406 = vector.extract_strided_slice %401 {offsets = [0, 96], sizes = [8, 32], strides = [1, 1]} : vector<8x128xf32> to vector<8x32xf32>
    %407 = arith.mulf %404, %358 : vector<8x32xf32>
    %408 = arith.mulf %403, %405 : vector<8x32xf32>
    %409 = arith.addf %407, %408 : vector<8x32xf32>
    %410 = math.tanh %409 : vector<8x32xf32>
    %411 = arith.mulf %406, %410 : vector<8x32xf32>
    %412 = arith.index_cast %c7_i32_104 : i32 to index
    %c0_114 = arith.constant 0 : index
    %c0_115 = arith.constant 0 : index
    %413 = vector.load %arg10[%412, %c0_114, %c0_115] : memref<8x8x32xf32, #tpu.memory_space<vmem>>, vector<1x8x32xf32>
    %414 = vector.shape_cast %413 : vector<1x8x32xf32> to vector<8x32xf32>
    %415 = vector.shape_cast %396 : vector<8x32xf32> to vector<1x8x32xf32>
    tpu.vector_store %arg10[%412, %c0_114, %c0_115], %415 {strides = array<i32>} : memref<8x8x32xf32, #tpu.memory_space<vmem>>, vector<1x8x32xf32>,
    %416 = arith.index_cast %369 : i32 to index
    %c0_116 = arith.constant 0 : index
    %c0_117 = arith.constant 0 : index
    %417 = vector.load %arg11[%416, %c0_116, %c0_117] : memref<8x8x32xf32, #tpu.memory_space<vmem>>, vector<1x8x32xf32>
    %418 = vector.shape_cast %417 : vector<1x8x32xf32> to vector<8x32xf32>
    %419 = vector.shape_cast %411 : vector<8x32xf32> to vector<1x8x32xf32>
    tpu.vector_store %arg11[%416, %c0_116, %c0_117], %419 {strides = array<i32>} : memref<8x8x32xf32, #tpu.memory_space<vmem>>, vector<1x8x32xf32>,
    %c8_i32 = arith.constant 8 : i32
    %c0_118 = arith.constant 0 : index
    %c0_119 = arith.constant 0 : index
    %c0_120 = arith.constant 0 : index
    %420 = vector.load %arg10[%c0_118, %c0_119, %c0_120] : memref<8x8x32xf32, #tpu.memory_space<vmem>>, vector<8x8x32xf32>
    %421 = vector.shape_cast %420 : vector<8x8x32xf32> to vector<64x32xf32>
    %c0_121 = arith.constant 0 : index
    %c0_122 = arith.constant 0 : index
    %c0_123 = arith.constant 0 : index
    %422 = vector.load %arg11[%c0_121, %c0_122, %c0_123] : memref<8x8x32xf32, #tpu.memory_space<vmem>>, vector<8x8x32xf32>
    %423 = vector.shape_cast %422 : vector<8x8x32xf32> to vector<64x32xf32>
    %c0_124 = arith.constant 0 : index
    %c0_125 = arith.constant 0 : index
    %424 = vector.load %arg5[%c0_124, %c0_125] : memref<32x128xf32, #tpu.memory_space<vmem>>, vector<32x128xf32>
    %cst_126 = arith.constant dense<0.000000e+00> : vector<64x128xf32>
    %425 = tpu.matmul %421, %424, %cst_126 {dimension_numbers = #tpu.dot_dimension_numbers<[1], [0], [0], [1], [0, 0, 1, 1], [], []>} : vector<64x32xf32>, vector<32x128xf32>, vector<64x128xf32> -> vector<64x128xf32>
    %c0_127 = arith.constant 0 : index
    %c0_128 = arith.constant 0 : index
    %426 = vector.load %arg6[%c0_127, %c0_128] : memref<32x128xf32, #tpu.memory_space<vmem>>, vector<32x128xf32>
    %cst_129 = arith.constant dense<0.000000e+00> : vector<64x128xf32>
    %427 = tpu.matmul %423, %426, %cst_129 {dimension_numbers = #tpu.dot_dimension_numbers<[1], [0], [0], [1], [0, 0, 1, 1], [], []>} : vector<64x32xf32>, vector<32x128xf32>, vector<64x128xf32> -> vector<64x128xf32>
    %428 = arith.addf %425, %427 : vector<64x128xf32>
    %c0_130 = arith.constant 0 : index
    %c0_131 = arith.constant 0 : index
    %429 = vector.load %arg7[%c0_130, %c0_131] : memref<1x128xf32, #tpu.memory_space<vmem>>, vector<1x128xf32>
    %430 = vector.broadcast %429 : vector<1x128xf32> to vector<64x128xf32>
    %431 = arith.addf %428, %430 : vector<64x128xf32>
    %c0_132 = arith.constant 0 : index
    %c0_133 = arith.constant 0 : index
    %432 = vector.load %arg8[%c0_132, %c0_133] : memref<64x128xf32, #tpu.memory_space<vmem>>, vector<64x128xf32>
    tpu.vector_store %arg8[%c0_132, %c0_133], %431 {strides = array<i32>} : memref<64x128xf32, #tpu.memory_space<vmem>>, vector<64x128xf32>,
    return
  }
}

</mosaic_0001>

<llo_original>
// kernel: tpu_custom_call.1
$region0: #{tpu_custom_call.1}
  #allocation0 [shape = 'u32[]', space=smem, size = 0x4, offset = 0x4, fixed_abs, tag = 'smem constant byte address 0x4 - core index']
  #allocation1 [shape = 'u32[144,128]{1,0:T(1,128)}', space=vmem, size = 0x12000, scoped, tag = 'internal scratch']
  #allocation2 [shape = 'f32[8,8,256]{2,1,0:T(8,128)}', space=vmem, size = 0x10000, scoped, tag = 'scratch operand']
  #allocation3 [shape = 'f32[8,8,32]{2,1,0:T(8,128)}', space=vmem, size = 0x8000, scoped, tag = 'scratch operand']
  #allocation4 [shape = 'f32[8,8,32]{2,1,0:T(8,128)}', space=vmem, size = 0x8000, scoped, tag = 'scratch operand']
  %s0 = inlined_call_operand.hbm [shape: f32[8,8,32], index: 0, kind: input, shape index: {}]
  %s1 = inlined_call_operand.hbm [shape: f32[32,256], index: 1, kind: input, shape index: {}]
  %s2 = inlined_call_operand.vmem [shape: f32[1,256], index: 2, kind: input, shape index: {}]
  %s3 = inlined_call_operand.hbm [shape: f32[32,128], index: 3, kind: input, shape index: {}]
  %s4 = inlined_call_operand.hbm [shape: f32[32,128], index: 4, kind: input, shape index: {}]
  %s5 = inlined_call_operand.hbm [shape: f32[32,128], index: 5, kind: input, shape index: {}]
  %s6 = inlined_call_operand.hbm [shape: f32[32,128], index: 6, kind: input, shape index: {}]
  %s7 = inlined_call_operand.vmem [shape: f32[1,128], index: 7, kind: input, shape index: {}]
  %s8 = inlined_call_operand.hbm [shape: f32[64,128], index: 8, kind: output, shape index: {}]
  %s9 = sld [smem:[#allocation0]]
  $region66: #{tpu_custom_call.1} parent=0
    _
  %s11 = ssub.s32 1, %s9
  %s12 = scalar_select 0, %s11, %s9
  $region1: #{tpu_custom_call.1} parent=0
    #allocation5 [shape = 'u8[32768]{0}', space=vmem, size = 0x8000, scoped, tag = 'input window, operand 0, single buffered']
    #allocation6 [shape = 's32[1]{0}', space=sflag, size = 0x4, scoped, tag = 'scoped memory for tpu_custom_call.1']
    #allocation7 [shape = 's32[1]{0}', space=sflag, size = 0x4, scoped, tag = 'scoped memory for tpu_custom_call.1']
    #allocation8 [shape = 'u8[32768]{0}', space=vmem, size = 0x8000, scoped, tag = 'input window, operand 1, single buffered']
    #allocation9 [shape = 's32[1]{0}', space=sflag, size = 0x4, scoped, tag = 'scoped memory for tpu_custom_call.1']
    #allocation10 [shape = 'u8[16384]{0}', space=vmem, size = 0x4000, scoped, tag = 'input window, operand 3, single buffered']
    #allocation11 [shape = 'u8[16384]{0}', space=vmem, size = 0x4000, scoped, tag = 'input window, operand 4, single buffered']
    #allocation12 [shape = 's32[1]{0}', space=sflag, size = 0x4, scoped, tag = 'scoped memory for tpu_custom_call.1']
    #allocation13 [shape = 'u8[16384]{0}', space=vmem, size = 0x4000, scoped, tag = 'input window, operand 5, single buffered']
    #allocation14 [shape = 'u8[16384]{0}', space=vmem, size = 0x4000, scoped, tag = 'input window, operand 6, single buffered']
    #allocation15 [shape = 's32[1]{0}', space=sflag, size = 0x4, scoped, tag = 'scoped memory for tpu_custom_call.1']
    #allocation16 [shape = 'u8[32768]{0}', space=vmem, size = 0x8000, scoped, tag = 'output window, operand 0, single buffered']
    %13 = vsyncpa [#allocation6], 0
    %14 = vsyncpa [#allocation9], 0
    %15 = vsyncpa [#allocation12], 0
    %16 = vsyncpa [#allocation15], 0
    %17 = vsyncpa [#allocation7], 0
    // Predicated region
    $region2: #{tpu_custom_call.1} parent=1 // pred_check
      _
    $region3: #{tpu_custom_call.1} parent=1 // pred_check_branch
      %19 = sbr.rel (0) target = $region5
    $region4: #{tpu_custom_call.1} parent=1 // pred_region
      %s21 = ssub.s32 1024, 1024
      %22 = vsyncadd [#allocation6], %s21
      %s23 = sshll.u32 [#allocation5], 4
      %s24 = int_to_ptr.vmem [resolvable:$true] %s23
      %29 = dma.hbm_to_vmem [thread:$0]  %s0, 1024, %s24, [#allocation6], 128, 128, 8
    $region5: #{tpu_custom_call.1} parent=1 // pred_fallthru
      _
    // Predicated region
    $region6: #{tpu_custom_call.1} parent=1 // pred_check
      _
    $region7: #{tpu_custom_call.1} parent=1 // pred_check_branch
      %31 = sbr.rel (0) target = $region9
    $region8: #{tpu_custom_call.1} parent=1 // pred_region
      %s33 = ssub.s32 1024, 1024
      %34 = vsyncadd [#allocation9], %s33
      %s35 = sshll.u32 [#allocation8], 4
      %s36 = int_to_ptr.vmem [resolvable:$true] %s35
      %41 = dma.hbm_to_vmem [thread:$0]  %s1, 1024, %s36, [#allocation9], 256, 256, 16
    $region9: #{tpu_custom_call.1} parent=1 // pred_fallthru
      _
    // Predicated region
    $region10: #{tpu_custom_call.1} parent=1 // pred_check
      _
    $region11: #{tpu_custom_call.1} parent=1 // pred_check_branch
      %43 = sbr.rel (0) target = $region13
    $region12: #{tpu_custom_call.1} parent=1 // pred_region
      _
    $region13: #{tpu_custom_call.1} parent=1 // pred_fallthru
      _
    // Predicated region
    $region14: #{tpu_custom_call.1} parent=1 // pred_check
      _
    $region15: #{tpu_custom_call.1} parent=1 // pred_check_branch
      %45 = sbr.rel (0) target = $region17
    $region16: #{tpu_custom_call.1} parent=1 // pred_region
      %s47 = ssub.s32 512, 512
      %48 = vsyncadd [#allocation9], %s47
      %s49 = sshll.u32 [#allocation10], 4
      %s50 = int_to_ptr.vmem [resolvable:$true] %s49
      %55 = dma.hbm_to_vmem [thread:$0]  %s3, 512, %s50, [#allocation9], 128, 128, 8
    $region17: #{tpu_custom_call.1} parent=1 // pred_fallthru
      _
    // Predicated region
    $region18: #{tpu_custom_call.1} parent=1 // pred_check
      _
    $region19: #{tpu_custom_call.1} parent=1 // pred_check_branch
      %57 = sbr.rel (0) target = $region21
    $region20: #{tpu_custom_call.1} parent=1 // pred_region
      %s59 = ssub.s32 512, 512
      %60 = vsyncadd [#allocation12], %s59
      %s61 = sshll.u32 [#allocation11], 4
      %s62 = int_to_ptr.vmem [resolvable:$true] %s61
      %67 = dma.hbm_to_vmem [thread:$0]  %s4, 512, %s62, [#allocation12], 128, 128, 8
    $region21: #{tpu_custom_call.1} parent=1 // pred_fallthru
      _
    // Predicated region
    $region22: #{tpu_custom_call.1} parent=1 // pred_check
      _
    $region23: #{tpu_custom_call.1} parent=1 // pred_check_branch
      %69 = sbr.rel (0) target = $region25
    $region24: #{tpu_custom_call.1} parent=1 // pred_region
      %s71 = ssub.s32 512, 512
      %72 = vsyncadd [#allocation12], %s71
      %s73 = sshll.u32 [#allocation13], 4
      %s74 = int_to_ptr.vmem [resolvable:$true] %s73
      %79 = dma.hbm_to_vmem [thread:$0]  %s5, 512, %s74, [#allocation12], 128, 128, 8
    $region25: #{tpu_custom_call.1} parent=1 // pred_fallthru
      _
    // Predicated region
    $region26: #{tpu_custom_call.1} parent=1 // pred_check
      _
    $region27: #{tpu_custom_call.1} parent=1 // pred_check_branch
      %81 = sbr.rel (0) target = $region29
    $region28: #{tpu_custom_call.1} parent=1 // pred_region
      %s83 = ssub.s32 512, 512
      %84 = vsyncadd [#allocation15], %s83
      %s85 = sshll.u32 [#allocation14], 4
      %s86 = int_to_ptr.vmem [resolvable:$true] %s85
      %91 = dma.hbm_to_vmem [thread:$0]  %s6, 512, %s86, [#allocation15], 128, 128, 8
    $region29: #{tpu_custom_call.1} parent=1 // pred_fallthru
      _
    // Predicated region
    $region30: #{tpu_custom_call.1} parent=1 // pred_check
      _
    $region31: #{tpu_custom_call.1} parent=1 // pred_check_branch
      %93 = sbr.rel (0) target = $region33
    $region32: #{tpu_custom_call.1} parent=1 // pred_region
      _
    $region33: #{tpu_custom_call.1} parent=1 // pred_fallthru
      _
    // Predicated region
    $region34: #{tpu_custom_call.1} parent=1 // pred_check
      _
    $region35: #{tpu_custom_call.1} parent=1 // pred_check_branch
      %95 = sbr.rel (0) target = $region37
    $region36: #{tpu_custom_call.1} parent=1 // pred_region
      %96 = dma.done [#allocation6], 1024
    $region37: #{tpu_custom_call.1} parent=1 // pred_fallthru
      _
    // Predicated region
    $region38: #{tpu_custom_call.1} parent=1 // pred_check
      _
    $region39: #{tpu_custom_call.1} parent=1 // pred_check_branch
      %98 = sbr.rel (0) target = $region41
    $region40: #{tpu_custom_call.1} parent=1 // pred_region
      %99 = dma.done [#allocation9], 1024
    $region41: #{tpu_custom_call.1} parent=1 // pred_fallthru
      _
    // Predicated region
    $region42: #{tpu_custom_call.1} parent=1 // pred_check
      _
    $region43: #{tpu_custom_call.1} parent=1 // pred_check_branch
      %101 = sbr.rel (0) target = $region45
    $region44: #{tpu_custom_call.1} parent=1 // pred_region
      %102 = dma.done [#allocation9], 512
    $region45: #{tpu_custom_call.1} parent=1 // pred_fallthru
      _
    // Predicated region
    $region46: #{tpu_custom_call.1} parent=1 // pred_check
      _
    $region47: #{tpu_custom_call.1} parent=1 // pred_check_branch
      %104 = sbr.rel (0) target = $region49
    $region48: #{tpu_custom_call.1} parent=1 // pred_region
      %105 = dma.done [#allocation12], 512
    $region49: #{tpu_custom_call.1} parent=1 // pred_fallthru
      _
    // Predicated region
    $region50: #{tpu_custom_call.1} parent=1 // pred_check
      _
    $region51: #{tpu_custom_call.1} parent=1 // pred_check_branch
      %107 = sbr.rel (0) target = $region53
    $region52: #{tpu_custom_call.1} parent=1 // pred_region
      %108 = dma.done [#allocation12], 512
    $region53: #{tpu_custom_call.1} parent=1 // pred_fallthru
      _
    // Predicated region
    $region54: #{tpu_custom_call.1} parent=1 // pred_check
      _
    $region55: #{tpu_custom_call.1} parent=1 // pred_check_branch
      %110 = sbr.rel (0) target = $region57
    $region56: #{tpu_custom_call.1} parent=1 // pred_region
      %111 = dma.done [#allocation15], 512
    $region57: #{tpu_custom_call.1} parent=1 // pred_fallthru
      _
    %v112 = vld [vmem:[#allocation5] sm:$0xff]
    %v113 = vld [vmem:[#allocation5 + $0x8] sm:$0xff]
    %v114 = vld [vmem:[#allocation5 + $0x10] sm:$0xff]
    %v115 = vld [vmem:[#allocation5 + $0x18] sm:$0xff]
    %v116 = vld [vmem:[#allocation5 + $0x20] sm:$0xff]
    %v117 = vld [vmem:[#allocation5 + $0x28] sm:$0xff]
    %v118 = vld [vmem:[#allocation5 + $0x30] sm:$0xff]
    %v119 = vld [vmem:[#allocation5 + $0x38] sm:$0xff]
    %v120 = vld [vmem:[#allocation8] sm:$0xff]
    %v121 = vld [vmem:[#allocation8 + $0x8] sm:$0xff]
    %v122 = vld [vmem:[#allocation8 + $0x10] sm:$0xff]
    %v123 = vld [vmem:[#allocation8 + $0x18] sm:$0xff]
    %v124 = vld [vmem:[#allocation8 + $0x20] sm:$0xff]
    %v125 = vld [vmem:[#allocation8 + $0x28] sm:$0xff]
    %v126 = vld [vmem:[#allocation8 + $0x30] sm:$0xff]
    %v127 = vld [vmem:[#allocation8 + $0x38] sm:$0xff]
    %v128 = vld [vmem:[%s2] sm:$0x3]
    %v130 = vlaneseq
    %v131 = vshrl.u32 %v130, 7
    %v132 = vsub.s32 0, %v131
    %v133 = vrot.slane %v128, %v132
    %v134 = vlaneseq
    %v135 = vshrl.u32 %v134, 7
    %v136 = vsub.s32 1, %v135
    %v137 = vrot.slane %v128, %v136
    %vm140 = vcmask 261120
    %v142 = vsel %vm140, %v112, 0
    %v145 = vsel %vm140, %v113, 0
    %v148 = vsel %vm140, %v114, 0
    %v151 = vsel %vm140, %v115, 0
    %v154 = vsel %vm140, %v116, 0
    %v157 = vsel %vm140, %v117, 0
    %v160 = vsel %vm140, %v118, 0
    %v163 = vsel %vm140, %v119, 0
    %165 = vmatprep.subr.mxu0 0.0
    %166 = vmatpush1.msra.mxu0 0.0
    %167 = vmatprep.subr.mxu0 0.0
    %168 = vmatpush1.msra.mxu0 0.0
    %169 = vmatprep.subr.mxu0 0.0
    %170 = vmatpush1.msra.mxu0 0.0
    %171 = vmatprep.subr.mxu0 0.0
    %172 = vmatpush1.msra.mxu0 0.0
    %173 = vmatprep.subr.mxu0 0.0
    %174 = vmatpush1.msra.mxu0 0.0
    %175 = vmatprep.subr.mxu0 0.0
    %176 = vmatpush1.msra.mxu0 0.0
    %177 = vmatprep.subr.mxu0 0.0
    %178 = vmatpush1.msra.mxu0 0.0
    %179 = vmatprep.subr.mxu0 0.0
    %180 = vmatpush1.msra.mxu0 0.0
    %181 = vmatprep.subr.mxu0 0.0
    %182 = vmatpush1.msra.mxu0 0.0
    %183 = vmatprep.subr.mxu0 0.0
    %184 = vmatpush1.msra.mxu0 0.0
    %185 = vmatprep.subr.mxu0 0.0
    %186 = vmatpush1.msra.mxu0 0.0
    %187 = vmatprep.subr.mxu0 0.0
    %188 = vmatpush1.msra.mxu0 0.0
    %189 = vmatprep.subr.mxu0 %v127
    %190 = vmatpush1.msra.mxu0 %v126
    %191 = vmatprep.subr.mxu0 %v125
    %192 = vmatpush1.msra.mxu0 %v124
    %193 = vmatprep.subr.mxu0 %v123
    %194 = vmatpush1.msra.mxu0 %v122
    %195 = vmatprep.subr.mxu0 %v121
    %196 = vmatpush1.msra.mxu0 %v120
    %197 = vmatprep.subr.mxu0 0.0
    %198 = vmatpush2.msra.mxu0 0.0
    %199 = vmatprep.subr.mxu0 0.0
    %200 = vmatpush2.msra.mxu0 0.0
    %201 = vmatprep.subr.mxu0 0.0
    %202 = vmatpush2.msra.mxu0 0.0
    %203 = vmatprep.subr.mxu0 0.0
    %204 = vmatpush2.msra.mxu0 0.0
    %205 = vmatprep.subr.mxu0 0.0
    %206 = vmatpush2.msra.mxu0 0.0
    %207 = vmatprep.subr.mxu0 0.0
    %208 = vmatpush2.msra.mxu0 0.0
    %209 = vmatprep.subr.mxu0 0.0
    %210 = vmatpush2.msra.mxu0 0.0
    %211 = vmatprep.subr.mxu0 0.0
    %212 = vmatpush2.msra.mxu0 0.0
    %213 = vmatprep.subr.mxu0 0.0
    %214 = vmatpush2.msra.mxu0 0.0
    %215 = vmatprep.subr.mxu0 0.0
    %216 = vmatpush2.msra.mxu0 0.0
    %217 = vmatprep.subr.mxu0 0.0
    %218 = vmatpush2.msra.mxu0 0.0
    %219 = vmatprep.subr.mxu0 0.0
    %220 = vmatpush2.msra.mxu0 0.0
    %221 = vmatprep.subr.mxu0 0.0
    %222 = vmatpush2.msra.mxu0 0.0
    %223 = vmatprep.subr.mxu0 0.0
    %224 = vmatpush2.msra.mxu0 0.0
    %225 = vmatprep.subr.mxu0 0.0
    %226 = vmatpush2.msra.mxu0 0.0
    %227 = vmatprep.subr.mxu0 0.0
    %228 = vmatpush2.msra.mxu0 0.0
    %229 = vmatprep.mubr.f32.mxu0 0.0
    %230 = vmatmul.mubr.f32.gmra.mxu0 %v142
    %v231 = vpop.f32.mrf.mxu0
    %v232 = vadd.f32 %v133, %v231
    %v233 = vpop.f32.mrf.mxu0
    %v234 = vadd.f32 %v137, %v233
    %235 = vmatprep.mubr.f32.mxu0 0.0
    %236 = vmatmul.mubr.f32.gmra.mxu0 %v145
    %v237 = vpop.f32.mrf.mxu0
    %v238 = vadd.f32 %v133, %v237
    %v239 = vpop.f32.mrf.mxu0
    %v240 = vadd.f32 %v137, %v239
    %241 = vmatprep.mubr.f32.mxu0 0.0
    %242 = vmatmul.mubr.f32.gmra.mxu0 %v148
    %v243 = vpop.f32.mrf.mxu0
    %v244 = vadd.f32 %v133, %v243
    %v245 = vpop.f32.mrf.mxu0
    %v246 = vadd.f32 %v137, %v245
    %247 = vmatprep.mubr.f32.mxu0 0.0
    %248 = vmatmul.mubr.f32.gmra.mxu0 %v151
    %v249 = vpop.f32.mrf.mxu0
    %v250 = vadd.f32 %v133, %v249
    %v251 = vpop.f32.mrf.mxu0
    %v252 = vadd.f32 %v137, %v251
    %253 = vmatprep.mubr.f32.mxu0 0.0
    %254 = vmatmul.mubr.f32.gmra.mxu0 %v154
    %v255 = vpop.f32.mrf.mxu0
    %v256 = vadd.f32 %v133, %v255
    %v257 = vpop.f32.mrf.mxu0
    %v258 = vadd.f32 %v137, %v257
    %259 = vmatprep.mubr.f32.mxu0 0.0
    %260 = vmatmul.mubr.f32.gmra.mxu0 %v157
    %v261 = vpop.f32.mrf.mxu0
    %v262 = vadd.f32 %v133, %v261
    %v263 = vpop.f32.mrf.mxu0
    %v264 = vadd.f32 %v137, %v263
    %265 = vmatprep.mubr.f32.mxu0 0.0
    %266 = vmatmul.mubr.f32.gmra.mxu0 %v160
    %v267 = vpop.f32.mrf.mxu0
    %v268 = vadd.f32 %v133, %v267
    %v269 = vpop.f32.mrf.mxu0
    %v270 = vadd.f32 %v137, %v269
    %271 = vmatprep.mubr.f32.mxu0 0.0
    %272 = vmatmul.mubr.f32.gmra.mxu0 %v163
    %v273 = vpop.f32.mrf.mxu0
    %v274 = vadd.f32 %v133, %v273
    %v275 = vpop.f32.mrf.mxu0
    %v276 = vadd.f32 %v137, %v275
    %277 = vdwg.mxu0
    %278 = vst [vmem:[#allocation2] sm:$0xff] %v232
    %279 = vst [vmem:[#allocation2 + $0x8] sm:$0xff] %v234
    %280 = vst [vmem:[#allocation2 + $0x10] sm:$0xff] %v238
    %281 = vst [vmem:[#allocation2 + $0x18] sm:$0xff] %v240
    %282 = vst [vmem:[#allocation2 + $0x20] sm:$0xff] %v244
    %283 = vst [vmem:[#allocation2 + $0x28] sm:$0xff] %v246
    %284 = vst [vmem:[#allocation2 + $0x30] sm:$0xff] %v250
    %285 = vst [vmem:[#allocation2 + $0x38] sm:$0xff] %v252
    %286 = vst [vmem:[#allocation2 + $0x40] sm:$0xff] %v256
    %287 = vst [vmem:[#allocation2 + $0x48] sm:$0xff] %v258
    %288 = vst [vmem:[#allocation2 + $0x50] sm:$0xff] %v262
    %289 = vst [vmem:[#allocation2 + $0x58] sm:$0xff] %v264
    %290 = vst [vmem:[#allocation2 + $0x60] sm:$0xff] %v268
    %291 = vst [vmem:[#allocation2 + $0x68] sm:$0xff] %v270
    %292 = vst [vmem:[#allocation2 + $0x70] sm:$0xff] %v274
    %293 = vst [vmem:[#allocation2 + $0x78] sm:$0xff] %v276
    %v294 = vld [vmem:[#allocation10] sm:$0xff]
    %v295 = vld [vmem:[#allocation10 + $0x8] sm:$0xff]
    %v296 = vld [vmem:[#allocation10 + $0x10] sm:$0xff]
    %v297 = vld [vmem:[#allocation10 + $0x18] sm:$0xff]
    %v298 = vld [vmem:[#allocation11] sm:$0xff]
    %v299 = vld [vmem:[#allocation11 + $0x8] sm:$0xff]
    %v300 = vld [vmem:[#allocation11 + $0x10] sm:$0xff]
    %v301 = vld [vmem:[#allocation11 + $0x18] sm:$0xff]
    %v302 = vld [vmem:[#allocation2] sm:$0xff]
    %s303 = scalar_lea.vmem [#allocation2], 112
    %v304 = vld [vmem:[%s303 + $0x8] sm:$0xff]
    %v306 = vsel %vm140, 0.0, 0
    %308 = vmatprep.subr.mxu0 0.0
    %309 = vmatpush1.msra.mxu0 0.0
    %310 = vmatprep.subr.mxu0 0.0
    %311 = vmatpush1.msra.mxu0 0.0
    %312 = vmatprep.subr.mxu0 0.0
    %313 = vmatpush1.msra.mxu0 0.0
    %314 = vmatprep.subr.mxu0 0.0
    %315 = vmatpush1.msra.mxu0 0.0
    %316 = vmatprep.subr.mxu0 0.0
    %317 = vmatpush1.msra.mxu0 0.0
    %318 = vmatprep.subr.mxu0 0.0
    %319 = vmatpush1.msra.mxu0 0.0
    %320 = vmatprep.subr.mxu0 0.0
    %321 = vmatpush1.msra.mxu0 0.0
    %322 = vmatprep.subr.mxu0 0.0
    %323 = vmatpush1.msra.mxu0 0.0
    %324 = vmatprep.subr.mxu0 0.0
    %325 = vmatpush1.msra.mxu0 0.0
    %326 = vmatprep.subr.mxu0 0.0
    %327 = vmatpush1.msra.mxu0 0.0
    %328 = vmatprep.subr.mxu0 0.0
    %329 = vmatpush1.msra.mxu0 0.0
    %330 = vmatprep.subr.mxu0 0.0
    %331 = vmatpush1.msra.mxu0 0.0
    %332 = vmatprep.subr.mxu0 0.0
    %333 = vmatpush1.msra.mxu0 %v297
    %334 = vmatprep.subr.mxu0 0.0
    %335 = vmatpush1.msra.mxu0 %v296
    %336 = vmatprep.subr.mxu0 0.0
    %337 = vmatpush1.msra.mxu0 %v295
    %338 = vmatprep.subr.mxu0 0.0
    %339 = vmatpush1.msra.mxu0 %v294
    %340 = vmatprep.subr.mxu0 0.0
    %341 = vmatpush2.msra.mxu0 0.0
    %342 = vmatprep.subr.mxu0 0.0
    %343 = vmatpush2.msra.mxu0 0.0
    %344 = vmatprep.subr.mxu0 0.0
    %345 = vmatpush2.msra.mxu0 0.0
    %346 = vmatprep.subr.mxu0 0.0
    %347 = vmatpush2.msra.mxu0 0.0
    %348 = vmatprep.subr.mxu0 0.0
    %349 = vmatpush2.msra.mxu0 0.0
    %350 = vmatprep.subr.mxu0 0.0
    %351 = vmatpush2.msra.mxu0 0.0
    %352 = vmatprep.subr.mxu0 0.0
    %353 = vmatpush2.msra.mxu0 0.0
    %354 = vmatprep.subr.mxu0 0.0
    %355 = vmatpush2.msra.mxu0 0.0
    %356 = vmatprep.subr.mxu0 0.0
    %357 = vmatpush2.msra.mxu0 0.0
    %358 = vmatprep.subr.mxu0 0.0
    %359 = vmatpush2.msra.mxu0 0.0
    %360 = vmatprep.subr.mxu0 0.0
    %361 = vmatpush2.msra.mxu0 0.0
    %362 = vmatprep.subr.mxu0 0.0
    %363 = vmatpush2.msra.mxu0 0.0
    %364 = vmatprep.subr.mxu0 0.0
    %365 = vmatpush2.msra.mxu0 0.0
    %366 = vmatprep.subr.mxu0 0.0
    %367 = vmatpush2.msra.mxu0 0.0
    %368 = vmatprep.subr.mxu0 0.0
    %369 = vmatpush2.msra.mxu0 0.0
    %370 = vmatprep.subr.mxu0 0.0
    %371 = vmatpush2.msra.mxu0 0.0
    %372 = vmatprep.mubr.f32.mxu0 0.0
    %373 = vmatmul.mubr.f32.gmra.mxu0 %v306
    %v374 = vpop.f32.mrf.mxu0
    %v375 = vadd.f32 0.0, %v374
    %v376 = vpop.f32.mrf.mxu0
    %377 = vdwg.mxu0
    %v378 = vadd.f32 %v302, %v375
    %379 = vmatprep.subr.mxu0 0.0
    %380 = vmatpush1.msra.mxu0 0.0
    %381 = vmatprep.subr.mxu0 0.0
    %382 = vmatpush1.msra.mxu0 0.0
    %383 = vmatprep.subr.mxu0 0.0
    %384 = vmatpush1.msra.mxu0 0.0
    %385 = vmatprep.subr.mxu0 0.0
    %386 = vmatpush1.msra.mxu0 0.0
    %387 = vmatprep.subr.mxu0 0.0
    %388 = vmatpush1.msra.mxu0 0.0
    %389 = vmatprep.subr.mxu0 0.0
    %390 = vmatpush1.msra.mxu0 0.0
    %391 = vmatprep.subr.mxu0 0.0
    %392 = vmatpush1.msra.mxu0 0.0
    %393 = vmatprep.subr.mxu0 0.0
    %394 = vmatpush1.msra.mxu0 0.0
    %395 = vmatprep.subr.mxu0 0.0
    %396 = vmatpush1.msra.mxu0 0.0
    %397 = vmatprep.subr.mxu0 0.0
    %398 = vmatpush1.msra.mxu0 0.0
    %399 = vmatprep.subr.mxu0 0.0
    %400 = vmatpush1.msra.mxu0 0.0
    %401 = vmatprep.subr.mxu0 0.0
    %402 = vmatpush1.msra.mxu0 0.0
    %403 = vmatprep.subr.mxu0 0.0
    %404 = vmatpush1.msra.mxu0 %v301
    %405 = vmatprep.subr.mxu0 0.0
    %406 = vmatpush1.msra.mxu0 %v300
    %407 = vmatprep.subr.mxu0 0.0
    %408 = vmatpush1.msra.mxu0 %v299
    %409 = vmatprep.subr.mxu0 0.0
    %410 = vmatpush1.msra.mxu0 %v298
    %411 = vmatprep.subr.mxu0 0.0
    %412 = vmatpush2.msra.mxu0 0.0
    %413 = vmatprep.subr.mxu0 0.0
    %414 = vmatpush2.msra.mxu0 0.0
    %415 = vmatprep.subr.mxu0 0.0
    %416 = vmatpush2.msra.mxu0 0.0
    %417 = vmatprep.subr.mxu0 0.0
    %418 = vmatpush2.msra.mxu0 0.0
    %419 = vmatprep.subr.mxu0 0.0
    %420 = vmatpush2.msra.mxu0 0.0
    %421 = vmatprep.subr.mxu0 0.0
    %422 = vmatpush2.msra.mxu0 0.0
    %423 = vmatprep.subr.mxu0 0.0
    %424 = vmatpush2.msra.mxu0 0.0
    %425 = vmatprep.subr.mxu0 0.0
    %426 = vmatpush2.msra.mxu0 0.0
    %427 = vmatprep.subr.mxu0 0.0
    %428 = vmatpush2.msra.mxu0 0.0
    %429 = vmatprep.subr.mxu0 0.0
    %430 = vmatpush2.msra.mxu0 0.0
    %431 = vmatprep.subr.mxu0 0.0
    %432 = vmatpush2.msra.mxu0 0.0
    %433 = vmatprep.subr.mxu0 0.0
    %434 = vmatpush2.msra.mxu0 0.0
    %435 = vmatprep.subr.mxu0 0.0
    %436 = vmatpush2.msra.mxu0 0.0
    %437 = vmatprep.subr.mxu0 0.0
    %438 = vmatpush2.msra.mxu0 0.0
    %439 = vmatprep.subr.mxu0 0.0
    %440 = vmatpush2.msra.mxu0 0.0
    %441 = vmatprep.subr.mxu0 0.0
    %442 = vmatpush2.msra.mxu0 0.0
    %443 = vmatprep.mubr.f32.mxu0 0.0
    %444 = vmatmul.mubr.f32.gmra.mxu0 %v306
    %v445 = vpop.f32.mrf.mxu0
    %v446 = vadd.f32 0.0, %v445
    %v447 = vpop.f32.mrf.mxu0
    %448 = vdwg.mxu0
    %v449 = vadd.f32 %v304, %v446
    %v450 = vxor.u32 %v378, 2147483648
    %v451 = vmul.f32 %v450, 1.442695
    %v452 = vpow.pop %v451
    %v453 = vadd.f32 %v452, 1.0
    %v454 = vrcp.pop %v453
    %v455 = vmul.f32 1.0, %v454
    %v456 = vtanh.pop %v378
    %v457 = vmul.f32 %v455, 0.0
    %459 = vrot.lane.b32.xlu0 %v456, 64
    %v460 = vpop.permute.xlu0 %459
    %v462 = vmul.f32 %v455, %v460
    %464 = vrot.lane.b32.xlu0 %v462, 32
    %v465 = vpop.permute.xlu0 %464
    %v467 = vadd.f32 %v457, %v465
    %v468 = vtanh.pop %v467
    %470 = vrot.lane.b32.xlu0 %v468, 64
    %v471 = vpop.permute.xlu0 %470
    %v473 = vmul.f32 %v455, %v471
    %v474 = vxor.u32 %v449, 2147483648
    %v475 = vmul.f32 %v474, 1.442695
    %v476 = vpow.pop %v475
    %v477 = vadd.f32 %v476, 1.0
    %v478 = vrcp.pop %v477
    %v479 = vmul.f32 1.0, %v478
    %v480 = vtanh.pop %v449
    %v481 = vmul.f32 %v479, 0.0
    %483 = vrot.lane.b32.xlu0 %v480, 64
    %v484 = vpop.permute.xlu0 %483
    %v486 = vmul.f32 %v479, %v484
    %488 = vrot.lane.b32.xlu0 %v486, 32
    %v489 = vpop.permute.xlu0 %488
    %v491 = vadd.f32 %v481, %v489
    %v492 = vtanh.pop %v491
    %494 = vrot.lane.b32.xlu0 %v492, 64
    %v495 = vpop.permute.xlu0 %494
    %v497 = vmul.f32 %v479, %v495
    %499 = vrot.lane.b32.xlu0 %v473, 32
    %v500 = vpop.permute.xlu0 %499
    %502 = vst.msk [vmem:[#allocation3] sm:$0xff] %vm140, %v500
    %504 = vrot.lane.b32.xlu0 %v497, 32
    %v505 = vpop.permute.xlu0 %504
    %s507 = scalar_lea.vmem [#allocation4], 56
    %508 = vst.msk [vmem:[%s507] sm:$0xff] %vm140, %v505
    %s509 = scalar_lea.vmem [#allocation2], 16
    %v510 = vld [vmem:[%s509] sm:$0xff]
    %s511 = scalar_lea.vmem [#allocation2], 96
    %v512 = vld [vmem:[%s511 + $0x8] sm:$0xff]
    %v513 = vsel %vm140, %v500, 0
    %515 = vmatprep.subr.mxu0 0.0
    %516 = vmatpush1.msra.mxu0 0.0
    %517 = vmatprep.subr.mxu0 0.0
    %518 = vmatpush1.msra.mxu0 0.0
    %519 = vmatprep.subr.mxu0 0.0
    %520 = vmatpush1.msra.mxu0 0.0
    %521 = vmatprep.subr.mxu0 0.0
    %522 = vmatpush1.msra.mxu0 0.0
    %523 = vmatprep.subr.mxu0 0.0
    %524 = vmatpush1.msra.mxu0 0.0
    %525 = vmatprep.subr.mxu0 0.0
    %526 = vmatpush1.msra.mxu0 0.0
    %527 = vmatprep.subr.mxu0 0.0
    %528 = vmatpush1.msra.mxu0 0.0
    %529 = vmatprep.subr.mxu0 0.0
    %530 = vmatpush1.msra.mxu0 0.0
    %531 = vmatprep.subr.mxu0 0.0
    %532 = vmatpush1.msra.mxu0 0.0
    %533 = vmatprep.subr.mxu0 0.0
    %534 = vmatpush1.msra.mxu0 0.0
    %535 = vmatprep.subr.mxu0 0.0
    %536 = vmatpush1.msra.mxu0 0.0
    %537 = vmatprep.subr.mxu0 0.0
    %538 = vmatpush1.msra.mxu0 0.0
    %539 = vmatprep.subr.mxu0 0.0
    %540 = vmatpush1.msra.mxu0 %v297
    %541 = vmatprep.subr.mxu0 0.0
    %542 = vmatpush1.msra.mxu0 %v296
    %543 = vmatprep.subr.mxu0 0.0
    %544 = vmatpush1.msra.mxu0 %v295
    %545 = vmatprep.subr.mxu0 0.0
    %546 = vmatpush1.msra.mxu0 %v294
    %547 = vmatprep.subr.mxu0 0.0
    %548 = vmatpush2.msra.mxu0 0.0
    %549 = vmatprep.subr.mxu0 0.0
    %550 = vmatpush2.msra.mxu0 0.0
    %551 = vmatprep.subr.mxu0 0.0
    %552 = vmatpush2.msra.mxu0 0.0
    %553 = vmatprep.subr.mxu0 0.0
    %554 = vmatpush2.msra.mxu0 0.0
    %555 = vmatprep.subr.mxu0 0.0
    %556 = vmatpush2.msra.mxu0 0.0
    %557 = vmatprep.subr.mxu0 0.0
    %558 = vmatpush2.msra.mxu0 0.0
    %559 = vmatprep.subr.mxu0 0.0
    %560 = vmatpush2.msra.mxu0 0.0
    %561 = vmatprep.subr.mxu0 0.0
    %562 = vmatpush2.msra.mxu0 0.0
    %563 = vmatprep.subr.mxu0 0.0
    %564 = vmatpush2.msra.mxu0 0.0
    %565 = vmatprep.subr.mxu0 0.0
    %566 = vmatpush2.msra.mxu0 0.0
    %567 = vmatprep.subr.mxu0 0.0
    %568 = vmatpush2.msra.mxu0 0.0
    %569 = vmatprep.subr.mxu0 0.0
    %570 = vmatpush2.msra.mxu0 0.0
    %571 = vmatprep.subr.mxu0 0.0
    %572 = vmatpush2.msra.mxu0 0.0
    %573 = vmatprep.subr.mxu0 0.0
    %574 = vmatpush2.msra.mxu0 0.0
    %575 = vmatprep.subr.mxu0 0.0
    %576 = vmatpush2.msra.mxu0 0.0
    %577 = vmatprep.subr.mxu0 0.0
    %578 = vmatpush2.msra.mxu0 0.0
    %579 = vmatprep.mubr.f32.mxu0 0.0
    %580 = vmatmul.mubr.f32.gmra.mxu0 %v513
    %v581 = vpop.f32.mrf.mxu0
    %v582 = vadd.f32 0.0, %v581
    %v583 = vpop.f32.mrf.mxu0
    %584 = vdwg.mxu0
    %v585 = vadd.f32 %v510, %v582
    %v586 = vsel %vm140, %v505, 0
    %588 = vmatprep.subr.mxu0 0.0
    %589 = vmatpush1.msra.mxu0 0.0
    %590 = vmatprep.subr.mxu0 0.0
    %591 = vmatpush1.msra.mxu0 0.0
    %592 = vmatprep.subr.mxu0 0.0
    %593 = vmatpush1.msra.mxu0 0.0
    %594 = vmatprep.subr.mxu0 0.0
    %595 = vmatpush1.msra.mxu0 0.0
    %596 = vmatprep.subr.mxu0 0.0
    %597 = vmatpush1.msra.mxu0 0.0
    %598 = vmatprep.subr.mxu0 0.0
    %599 = vmatpush1.msra.mxu0 0.0
    %600 = vmatprep.subr.mxu0 0.0
    %601 = vmatpush1.msra.mxu0 0.0
    %602 = vmatprep.subr.mxu0 0.0
    %603 = vmatpush1.msra.mxu0 0.0
    %604 = vmatprep.subr.mxu0 0.0
    %605 = vmatpush1.msra.mxu0 0.0
    %606 = vmatprep.subr.mxu0 0.0
    %607 = vmatpush1.msra.mxu0 0.0
    %608 = vmatprep.subr.mxu0 0.0
    %609 = vmatpush1.msra.mxu0 0.0
    %610 = vmatprep.subr.mxu0 0.0
    %611 = vmatpush1.msra.mxu0 0.0
    %612 = vmatprep.subr.mxu0 0.0
    %613 = vmatpush1.msra.mxu0 %v301
    %614 = vmatprep.subr.mxu0 0.0
    %615 = vmatpush1.msra.mxu0 %v300
    %616 = vmatprep.subr.mxu0 0.0
    %617 = vmatpush1.msra.mxu0 %v299
    %618 = vmatprep.subr.mxu0 0.0
    %619 = vmatpush1.msra.mxu0 %v298
    %620 = vmatprep.subr.mxu0 0.0
    %621 = vmatpush2.msra.mxu0 0.0
    %622 = vmatprep.subr.mxu0 0.0
    %623 = vmatpush2.msra.mxu0 0.0
    %624 = vmatprep.subr.mxu0 0.0
    %625 = vmatpush2.msra.mxu0 0.0
    %626 = vmatprep.subr.mxu0 0.0
    %627 = vmatpush2.msra.mxu0 0.0
    %628 = vmatprep.subr.mxu0 0.0
    %629 = vmatpush2.msra.mxu0 0.0
    %630 = vmatprep.subr.mxu0 0.0
    %631 = vmatpush2.msra.mxu0 0.0
    %632 = vmatprep.subr.mxu0 0.0
    %633 = vmatpush2.msra.mxu0 0.0
    %634 = vmatprep.subr.mxu0 0.0
    %635 = vmatpush2.msra.mxu0 0.0
    %636 = vmatprep.subr.mxu0 0.0
    %637 = vmatpush2.msra.mxu0 0.0
    %638 = vmatprep.subr.mxu0 0.0
    %639 = vmatpush2.msra.mxu0 0.0
    %640 = vmatprep.subr.mxu0 0.0
    %641 = vmatpush2.msra.mxu0 0.0
    %642 = vmatprep.subr.mxu0 0.0
    %643 = vmatpush2.msra.mxu0 0.0
    %644 = vmatprep.subr.mxu0 0.0
    %645 = vmatpush2.msra.mxu0 0.0
    %646 = vmatprep.subr.mxu0 0.0
    %647 = vmatpush2.msra.mxu0 0.0
    %648 = vmatprep.subr.mxu0 0.0
    %649 = vmatpush2.msra.mxu0 0.0
    %650 = vmatprep.subr.mxu0 0.0
    %651 = vmatpush2.msra.mxu0 0.0
    %652 = vmatprep.mubr.f32.mxu0 0.0
    %653 = vmatmul.mubr.f32.gmra.mxu0 %v586
    %v654 = vpop.f32.mrf.mxu0
    %v655 = vadd.f32 0.0, %v654
    %v656 = vpop.f32.mrf.mxu0
    %657 = vdwg.mxu0
    %v658 = vadd.f32 %v512, %v655
    %v659 = vxor.u32 %v585, 2147483648
    %v660 = vmul.f32 %v659, 1.442695
    %v661 = vpow.pop %v660
    %v662 = vadd.f32 %v661, 1.0
    %v663 = vrcp.pop %v662
    %v664 = vmul.f32 1.0, %v663
    %v665 = vtanh.pop %v585
    %v666 = vmul.f32 %v664, %v467
    %668 = vrot.lane.b32.xlu0 %v665, 64
    %v669 = vpop.permute.xlu0 %668
    %v671 = vmul.f32 %v664, %v669
    %673 = vrot.lane.b32.xlu0 %v671, 32
    %v674 = vpop.permute.xlu0 %673
    %v676 = vadd.f32 %v666, %v674
    %v677 = vtanh.pop %v676
    %679 = vrot.lane.b32.xlu0 %v677, 64
    %v680 = vpop.permute.xlu0 %679
    %v682 = vmul.f32 %v664, %v680
    %v683 = vxor.u32 %v658, 2147483648
    %v684 = vmul.f32 %v683, 1.442695
    %v685 = vpow.pop %v684
    %v686 = vadd.f32 %v685, 1.0
    %v687 = vrcp.pop %v686
    %v688 = vmul.f32 1.0, %v687
    %v689 = vtanh.pop %v658
    %v690 = vmul.f32 %v688, %v491
    %692 = vrot.lane.b32.xlu0 %v689, 64
    %v693 = vpop.permute.xlu0 %692
    %v695 = vmul.f32 %v688, %v693
    %697 = vrot.lane.b32.xlu0 %v695, 32
    %v698 = vpop.permute.xlu0 %697
    %v700 = vadd.f32 %v690, %v698
    %v701 = vtanh.pop %v700
    %703 = vrot.lane.b32.xlu0 %v701, 64
    %v704 = vpop.permute.xlu0 %703
    %v706 = vmul.f32 %v688, %v704
    %708 = vrot.lane.b32.xlu0 %v682, 32
    %v709 = vpop.permute.xlu0 %708
    %s711 = scalar_lea.vmem [#allocation3], 8
    %712 = vst.msk [vmem:[%s711] sm:$0xff] %vm140, %v709
    %714 = vrot.lane.b32.xlu0 %v706, 32
    %v715 = vpop.permute.xlu0 %714
    %s717 = scalar_lea.vmem [#allocation4], 48
    %718 = vst.msk [vmem:[%s717] sm:$0xff] %vm140, %v715
    %s719 = scalar_lea.vmem [#allocation2], 32
    %v720 = vld [vmem:[%s719] sm:$0xff]
    %s721 = scalar_lea.vmem [#allocation2], 80
    %v722 = vld [vmem:[%s721 + $0x8] sm:$0xff]
    %v723 = vsel %vm140, %v709, 0
    %725 = vmatprep.subr.mxu0 0.0
    %726 = vmatpush1.msra.mxu0 0.0
    %727 = vmatprep.subr.mxu0 0.0
    %728 = vmatpush1.msra.mxu0 0.0
    %729 = vmatprep.subr.mxu0 0.0
    %730 = vmatpush1.msra.mxu0 0.0
    %731 = vmatprep.subr.mxu0 0.0
    %732 = vmatpush1.msra.mxu0 0.0
    %733 = vmatprep.subr.mxu0 0.0
    %734 = vmatpush1.msra.mxu0 0.0
    %735 = vmatprep.subr.mxu0 0.0
    %736 = vmatpush1.msra.mxu0 0.0
    %737 = vmatprep.subr.mxu0 0.0
    %738 = vmatpush1.msra.mxu0 0.0
    %739 = vmatprep.subr.mxu0 0.0
    %740 = vmatpush1.msra.mxu0 0.0
    %741 = vmatprep.subr.mxu0 0.0
    %742 = vmatpush1.msra.mxu0 0.0
    %743 = vmatprep.subr.mxu0 0.0
    %744 = vmatpush1.msra.mxu0 0.0
    %745 = vmatprep.subr.mxu0 0.0
    %746 = vmatpush1.msra.mxu0 0.0
    %747 = vmatprep.subr.mxu0 0.0
    %748 = vmatpush1.msra.mxu0 0.0
    %749 = vmatprep.subr.mxu0 0.0
    %750 = vmatpush1.msra.mxu0 %v297
    %751 = vmatprep.subr.mxu0 0.0
    %752 = vmatpush1.msra.mxu0 %v296
    %753 = vmatprep.subr.mxu0 0.0
    %754 = vmatpush1.msra.mxu0 %v295
    %755 = vmatprep.subr.mxu0 0.0
    %756 = vmatpush1.msra.mxu0 %v294
    %757 = vmatprep.subr.mxu0 0.0
    %758 = vmatpush2.msra.mxu0 0.0
    %759 = vmatprep.subr.mxu0 0.0
    %760 = vmatpush2.msra.mxu0 0.0
    %761 = vmatprep.subr.mxu0 0.0
    %762 = vmatpush2.msra.mxu0 0.0
    %763 = vmatprep.subr.mxu0 0.0
    %764 = vmatpush2.msra.mxu0 0.0
    %765 = vmatprep.subr.mxu0 0.0
    %766 = vmatpush2.msra.mxu0 0.0
    %767 = vmatprep.subr.mxu0 0.0
    %768 = vmatpush2.msra.mxu0 0.0
    %769 = vmatprep.subr.mxu0 0.0
    %770 = vmatpush2.msra.mxu0 0.0
    %771 = vmatprep.subr.mxu0 0.0
    %772 = vmatpush2.msra.mxu0 0.0
    %773 = vmatprep.subr.mxu0 0.0
    %774 = vmatpush2.msra.mxu0 0.0
    %775 = vmatprep.subr.mxu0 0.0
    %776 = vmatpush2.msra.mxu0 0.0
    %777 = vmatprep.subr.mxu0 0.0
    %778 = vmatpush2.msra.mxu0 0.0
    %779 = vmatprep.subr.mxu0 0.0
    %780 = vmatpush2.msra.mxu0 0.0
    %781 = vmatprep.subr.mxu0 0.0
    %782 = vmatpush2.msra.mxu0 0.0
    %783 = vmatprep.subr.mxu0 0.0
    %784 = vmatpush2.msra.mxu0 0.0
    %785 = vmatprep.subr.mxu0 0.0
    %786 = vmatpush2.msra.mxu0 0.0
    %787 = vmatprep.subr.mxu0 0.0
    %788 = vmatpush2.msra.mxu0 0.0
    %789 = vmatprep.mubr.f32.mxu0 0.0
    %790 = vmatmul.mubr.f32.gmra.mxu0 %v723
    %v791 = vpop.f32.mrf.mxu0
    %v792 = vadd.f32 0.0, %v791
    %v793 = vpop.f32.mrf.mxu0
    %794 = vdwg.mxu0
    %v795 = vadd.f32 %v720, %v792
    %v796 = vsel %vm140, %v715, 0
    %798 = vmatprep.subr.mxu0 0.0
    %799 = vmatpush1.msra.mxu0 0.0
    %800 = vmatprep.subr.mxu0 0.0
    %801 = vmatpush1.msra.mxu0 0.0
    %802 = vmatprep.subr.mxu0 0.0
    %803 = vmatpush1.msra.mxu0 0.0
    %804 = vmatprep.subr.mxu0 0.0
    %805 = vmatpush1.msra.mxu0 0.0
    %806 = vmatprep.subr.mxu0 0.0
    %807 = vmatpush1.msra.mxu0 0.0
    %808 = vmatprep.subr.mxu0 0.0
    %809 = vmatpush1.msra.mxu0 0.0
    %810 = vmatprep.subr.mxu0 0.0
    %811 = vmatpush1.msra.mxu0 0.0
    %812 = vmatprep.subr.mxu0 0.0
    %813 = vmatpush1.msra.mxu0 0.0
    %814 = vmatprep.subr.mxu0 0.0
    %815 = vmatpush1.msra.mxu0 0.0
    %816 = vmatprep.subr.mxu0 0.0
    %817 = vmatpush1.msra.mxu0 0.0
    %818 = vmatprep.subr.mxu0 0.0
    %819 = vmatpush1.msra.mxu0 0.0
    %820 = vmatprep.subr.mxu0 0.0
    %821 = vmatpush1.msra.mxu0 0.0
    %822 = vmatprep.subr.mxu0 0.0
    %823 = vmatpush1.msra.mxu0 %v301
    %824 = vmatprep.subr.mxu0 0.0
    %825 = vmatpush1.msra.mxu0 %v300
    %826 = vmatprep.subr.mxu0 0.0
    %827 = vmatpush1.msra.mxu0 %v299
    %828 = vmatprep.subr.mxu0 0.0
    %829 = vmatpush1.msra.mxu0 %v298
    %830 = vmatprep.subr.mxu0 0.0
    %831 = vmatpush2.msra.mxu0 0.0
    %832 = vmatprep.subr.mxu0 0.0
    %833 = vmatpush2.msra.mxu0 0.0
    %834 = vmatprep.subr.mxu0 0.0
    %835 = vmatpush2.msra.mxu0 0.0
    %836 = vmatprep.subr.mxu0 0.0
    %837 = vmatpush2.msra.mxu0 0.0
    %838 = vmatprep.subr.mxu0 0.0
    %839 = vmatpush2.msra.mxu0 0.0
    %840 = vmatprep.subr.mxu0 0.0
    %841 = vmatpush2.msra.mxu0 0.0
    %842 = vmatprep.subr.mxu0 0.0
    %843 = vmatpush2.msra.mxu0 0.0
    %844 = vmatprep.subr.mxu0 0.0
    %845 = vmatpush2.msra.mxu0 0.0
    %846 = vmatprep.subr.mxu0 0.0
    %847 = vmatpush2.msra.mxu0 0.0
    %848 = vmatprep.subr.mxu0 0.0
    %849 = vmatpush2.msra.mxu0 0.0
    %850 = vmatprep.subr.mxu0 0.0
    %851 = vmatpush2.msra.mxu0 0.0
    %852 = vmatprep.subr.mxu0 0.0
    %853 = vmatpush2.msra.mxu0 0.0
    %854 = vmatprep.subr.mxu0 0.0
    %855 = vmatpush2.msra.mxu0 0.0
    %856 = vmatprep.subr.mxu0 0.0
    %857 = vmatpush2.msra.mxu0 0.0
    %858 = vmatprep.subr.mxu0 0.0
    %859 = vmatpush2.msra.mxu0 0.0
    %860 = vmatprep.subr.mxu0 0.0
    %861 = vmatpush2.msra.mxu0 0.0
    %862 = vmatprep.mubr.f32.mxu0 0.0
    %863 = vmatmul.mubr.f32.gmra.mxu0 %v796
    %v864 = vpop.f32.mrf.mxu0
    %v865 = vadd.f32 0.0, %v864
    %v866 = vpop.f32.mrf.mxu0
    %867 = vdwg.mxu0
    %v868 = vadd.f32 %v722, %v865
    %v869 = vxor.u32 %v795, 2147483648
    %v870 = vmul.f32 %v869, 1.442695
    %v871 = vpow.pop %v870
    %v872 = vadd.f32 %v871, 1.0
    %v873 = vrcp.pop %v872
    %v874 = vmul.f32 1.0, %v873
    %v875 = vtanh.pop %v795
    %v876 = vmul.f32 %v874, %v676
    %878 = vrot.lane.b32.xlu0 %v875, 64
    %v879 = vpop.permute.xlu0 %878
    %v881 = vmul.f32 %v874, %v879
    %883 = vrot.lane.b32.xlu0 %v881, 32
    %v884 = vpop.permute.xlu0 %883
    %v886 = vadd.f32 %v876, %v884
    %v887 = vtanh.pop %v886
    %889 = vrot.lane.b32.xlu0 %v887, 64
    %v890 = vpop.permute.xlu0 %889
    %v892 = vmul.f32 %v874, %v890
    %v893 = vxor.u32 %v868, 2147483648
    %v894 = vmul.f32 %v893, 1.442695
    %v895 = vpow.pop %v894
    %v896 = vadd.f32 %v895, 1.0
    %v897 = vrcp.pop %v896
    %v898 = vmul.f32 1.0, %v897
    %v899 = vtanh.pop %v868
    %v900 = vmul.f32 %v898, %v700
    %902 = vrot.lane.b32.xlu0 %v899, 64
    %v903 = vpop.permute.xlu0 %902
    %v905 = vmul.f32 %v898, %v903
    %907 = vrot.lane.b32.xlu0 %v905, 32
    %v908 = vpop.permute.xlu0 %907
    %v910 = vadd.f32 %v900, %v908
    %v911 = vtanh.pop %v910
    %913 = vrot.lane.b32.xlu0 %v911, 64
    %v914 = vpop.permute.xlu0 %913
    %v916 = vmul.f32 %v898, %v914
    %918 = vrot.lane.b32.xlu0 %v892, 32
    %v919 = vpop.permute.xlu0 %918
    %s921 = scalar_lea.vmem [#allocation3], 16
    %922 = vst.msk [vmem:[%s921] sm:$0xff] %vm140, %v919
    %924 = vrot.lane.b32.xlu0 %v916, 32
    %v925 = vpop.permute.xlu0 %924
    %s927 = scalar_lea.vmem [#allocation4], 40
    %928 = vst.msk [vmem:[%s927] sm:$0xff] %vm140, %v925
    %s929 = scalar_lea.vmem [#allocation2], 48
    %v930 = vld [vmem:[%s929] sm:$0xff]
    %s931 = scalar_lea.vmem [#allocation2], 64
    %v932 = vld [vmem:[%s931 + $0x8] sm:$0xff]
    %v933 = vsel %vm140, %v919, 0
    %935 = vmatprep.subr.mxu0 0.0
    %936 = vmatpush1.msra.mxu0 0.0
    %937 = vmatprep.subr.mxu0 0.0
    %938 = vmatpush1.msra.mxu0 0.0
    %939 = vmatprep.subr.mxu0 0.0
    %940 = vmatpush1.msra.mxu0 0.0
    %941 = vmatprep.subr.mxu0 0.0
    %942 = vmatpush1.msra.mxu0 0.0
    %943 = vmatprep.subr.mxu0 0.0
    %944 = vmatpush1.msra.mxu0 0.0
    %945 = vmatprep.subr.mxu0 0.0
    %946 = vmatpush1.msra.mxu0 0.0
    %947 = vmatprep.subr.mxu0 0.0
    %948 = vmatpush1.msra.mxu0 0.0
    %949 = vmatprep.subr.mxu0 0.0
    %950 = vmatpush1.msra.mxu0 0.0
    %951 = vmatprep.subr.mxu0 0.0
    %952 = vmatpush1.msra.mxu0 0.0
    %953 = vmatprep.subr.mxu0 0.0
    %954 = vmatpush1.msra.mxu0 0.0
    %955 = vmatprep.subr.mxu0 0.0
    %956 = vmatpush1.msra.mxu0 0.0
    %957 = vmatprep.subr.mxu0 0.0
    %958 = vmatpush1.msra.mxu0 0.0
    %959 = vmatprep.subr.mxu0 0.0
    %960 = vmatpush1.msra.mxu0 %v297
    %961 = vmatprep.subr.mxu0 0.0
    %962 = vmatpush1.msra.mxu0 %v296
    %963 = vmatprep.subr.mxu0 0.0
    %964 = vmatpush1.msra.mxu0 %v295
    %965 = vmatprep.subr.mxu0 0.0
    %966 = vmatpush1.msra.mxu0 %v294
    %967 = vmatprep.subr.mxu0 0.0
    %968 = vmatpush2.msra.mxu0 0.0
    %969 = vmatprep.subr.mxu0 0.0
    %970 = vmatpush2.msra.mxu0 0.0
    %971 = vmatprep.subr.mxu0 0.0
    %972 = vmatpush2.msra.mxu0 0.0
    %973 = vmatprep.subr.mxu0 0.0
    %974 = vmatpush2.msra.mxu0 0.0
    %975 = vmatprep.subr.mxu0 0.0
    %976 = vmatpush2.msra.mxu0 0.0
    %977 = vmatprep.subr.mxu0 0.0
    %978 = vmatpush2.msra.mxu0 0.0
    %979 = vmatprep.subr.mxu0 0.0
    %980 = vmatpush2.msra.mxu0 0.0
    %981 = vmatprep.subr.mxu0 0.0
    %982 = vmatpush2.msra.mxu0 0.0
    %983 = vmatprep.subr.mxu0 0.0
    %984 = vmatpush2.msra.mxu0 0.0
    %985 = vmatprep.subr.mxu0 0.0
    %986 = vmatpush2.msra.mxu0 0.0
    %987 = vmatprep.subr.mxu0 0.0
    %988 = vmatpush2.msra.mxu0 0.0
    %989 = vmatprep.subr.mxu0 0.0
    %990 = vmatpush2.msra.mxu0 0.0
    %991 = vmatprep.subr.mxu0 0.0
    %992 = vmatpush2.msra.mxu0 0.0
    %993 = vmatprep.subr.mxu0 0.0
    %994 = vmatpush2.msra.mxu0 0.0
    %995 = vmatprep.subr.mxu0 0.0
    %996 = vmatpush2.msra.mxu0 0.0
    %997 = vmatprep.subr.mxu0 0.0
    %998 = vmatpush2.msra.mxu0 0.0
    %999 = vmatprep.mubr.f32.mxu0 0.0
    %1000 = vmatmul.mubr.f32.gmra.mxu0 %v933
    %v1001 = vpop.f32.mrf.mxu0
    %v1002 = vadd.f32 0.0, %v1001
    %v1003 = vpop.f32.mrf.mxu0
    %1004 = vdwg.mxu0
    %v1005 = vadd.f32 %v930, %v1002
    %v1006 = vsel %vm140, %v925, 0
    %1008 = vmatprep.subr.mxu0 0.0
    %1009 = vmatpush1.msra.mxu0 0.0
    %1010 = vmatprep.subr.mxu0 0.0
    %1011 = vmatpush1.msra.mxu0 0.0
    %1012 = vmatprep.subr.mxu0 0.0
    %1013 = vmatpush1.msra.mxu0 0.0
    %1014 = vmatprep.subr.mxu0 0.0
    %1015 = vmatpush1.msra.mxu0 0.0
    %1016 = vmatprep.subr.mxu0 0.0
    %1017 = vmatpush1.msra.mxu0 0.0
    %1018 = vmatprep.subr.mxu0 0.0
    %1019 = vmatpush1.msra.mxu0 0.0
    %1020 = vmatprep.subr.mxu0 0.0
    %1021 = vmatpush1.msra.mxu0 0.0
    %1022 = vmatprep.subr.mxu0 0.0
    %1023 = vmatpush1.msra.mxu0 0.0
    %1024 = vmatprep.subr.mxu0 0.0
    %1025 = vmatpush1.msra.mxu0 0.0
    %1026 = vmatprep.subr.mxu0 0.0
    %1027 = vmatpush1.msra.mxu0 0.0
    %1028 = vmatprep.subr.mxu0 0.0
    %1029 = vmatpush1.msra.mxu0 0.0
    %1030 = vmatprep.subr.mxu0 0.0
    %1031 = vmatpush1.msra.mxu0 0.0
    %1032 = vmatprep.subr.mxu0 0.0
    %1033 = vmatpush1.msra.mxu0 %v301
    %1034 = vmatprep.subr.mxu0 0.0
    %1035 = vmatpush1.msra.mxu0 %v300
    %1036 = vmatprep.subr.mxu0 0.0
    %1037 = vmatpush1.msra.mxu0 %v299
    %1038 = vmatprep.subr.mxu0 0.0
    %1039 = vmatpush1.msra.mxu0 %v298
    %1040 = vmatprep.subr.mxu0 0.0
    %1041 = vmatpush2.msra.mxu0 0.0
    %1042 = vmatprep.subr.mxu0 0.0
    %1043 = vmatpush2.msra.mxu0 0.0
    %1044 = vmatprep.subr.mxu0 0.0
    %1045 = vmatpush2.msra.mxu0 0.0
    %1046 = vmatprep.subr.mxu0 0.0
    %1047 = vmatpush2.msra.mxu0 0.0
    %1048 = vmatprep.subr.mxu0 0.0
    %1049 = vmatpush2.msra.mxu0 0.0
    %1050 = vmatprep.subr.mxu0 0.0
    %1051 = vmatpush2.msra.mxu0 0.0
    %1052 = vmatprep.subr.mxu0 0.0
    %1053 = vmatpush2.msra.mxu0 0.0
    %1054 = vmatprep.subr.mxu0 0.0
    %1055 = vmatpush2.msra.mxu0 0.0
    %1056 = vmatprep.subr.mxu0 0.0
    %1057 = vmatpush2.msra.mxu0 0.0
    %1058 = vmatprep.subr.mxu0 0.0
    %1059 = vmatpush2.msra.mxu0 0.0
    %1060 = vmatprep.subr.mxu0 0.0
    %1061 = vmatpush2.msra.mxu0 0.0
    %1062 = vmatprep.subr.mxu0 0.0
    %1063 = vmatpush2.msra.mxu0 0.0
    %1064 = vmatprep.subr.mxu0 0.0
    %1065 = vmatpush2.msra.mxu0 0.0
    %1066 = vmatprep.subr.mxu0 0.0
    %1067 = vmatpush2.msra.mxu0 0.0
    %1068 = vmatprep.subr.mxu0 0.0
    %1069 = vmatpush2.msra.mxu0 0.0
    %1070 = vmatprep.subr.mxu0 0.0
    %1071 = vmatpush2.msra.mxu0 0.0
    %1072 = vmatprep.mubr.f32.mxu0 0.0
    %1073 = vmatmul.mubr.f32.gmra.mxu0 %v1006
    %v1074 = vpop.f32.mrf.mxu0
    %v1075 = vadd.f32 0.0, %v1074
    %v1076 = vpop.f32.mrf.mxu0
    %1077 = vdwg.mxu0
    %v1078 = vadd.f32 %v932, %v1075
    %v1079 = vxor.u32 %v1005, 2147483648
    %v1080 = vmul.f32 %v1079, 1.442695
    %v1081 = vpow.pop %v1080
    %v1082 = vadd.f32 %v1081, 1.0
    %v1083 = vrcp.pop %v1082
    %v1084 = vmul.f32 1.0, %v1083
    %v1085 = vtanh.pop %v1005
    %v1086 = vmul.f32 %v1084, %v886
    %1088 = vrot.lane.b32.xlu0 %v1085, 64
    %v1089 = vpop.permute.xlu0 %1088
    %v1091 = vmul.f32 %v1084, %v1089
    %1093 = vrot.lane.b32.xlu0 %v1091, 32
    %v1094 = vpop.permute.xlu0 %1093
    %v1096 = vadd.f32 %v1086, %v1094
    %v1097 = vtanh.pop %v1096
    %1099 = vrot.lane.b32.xlu0 %v1097, 64
    %v1100 = vpop.permute.xlu0 %1099
    %v1102 = vmul.f32 %v1084, %v1100
    %v1103 = vxor.u32 %v1078, 2147483648
    %v1104 = vmul.f32 %v1103, 1.442695
    %v1105 = vpow.pop %v1104
    %v1106 = vadd.f32 %v1105, 1.0
    %v1107 = vrcp.pop %v1106
    %v1108 = vmul.f32 1.0, %v1107
    %v1109 = vtanh.pop %v1078
    %v1110 = vmul.f32 %v1108, %v910
    %1112 = vrot.lane.b32.xlu0 %v1109, 64
    %v1113 = vpop.permute.xlu0 %1112
    %v1115 = vmul.f32 %v1108, %v1113
    %1117 = vrot.lane.b32.xlu0 %v1115, 32
    %v1118 = vpop.permute.xlu0 %1117
    %v1120 = vadd.f32 %v1110, %v1118
    %v1121 = vtanh.pop %v1120
    %1123 = vrot.lane.b32.xlu0 %v1121, 64
    %v1124 = vpop.permute.xlu0 %1123
    %v1126 = vmul.f32 %v1108, %v1124
    %1128 = vrot.lane.b32.xlu0 %v1102, 32
    %v1129 = vpop.permute.xlu0 %1128
    %s1131 = scalar_lea.vmem [#allocation3], 24
    %1132 = vst.msk [vmem:[%s1131] sm:$0xff] %vm140, %v1129
    %1134 = vrot.lane.b32.xlu0 %v1126, 32
    %v1135 = vpop.permute.xlu0 %1134
    %s1137 = scalar_lea.vmem [#allocation4], 32
    %1138 = vst.msk [vmem:[%s1137] sm:$0xff] %vm140, %v1135
    %v1139 = vld [vmem:[%s931] sm:$0xff]
    %v1140 = vld [vmem:[%s929 + $0x8] sm:$0xff]
    %v1141 = vsel %vm140, %v1129, 0
    %1143 = vmatprep.subr.mxu0 0.0
    %1144 = vmatpush1.msra.mxu0 0.0
    %1145 = vmatprep.subr.mxu0 0.0
    %1146 = vmatpush1.msra.mxu0 0.0
    %1147 = vmatprep.subr.mxu0 0.0
    %1148 = vmatpush1.msra.mxu0 0.0
    %1149 = vmatprep.subr.mxu0 0.0
    %1150 = vmatpush1.msra.mxu0 0.0
    %1151 = vmatprep.subr.mxu0 0.0
    %1152 = vmatpush1.msra.mxu0 0.0
    %1153 = vmatprep.subr.mxu0 0.0
    %1154 = vmatpush1.msra.mxu0 0.0
    %1155 = vmatprep.subr.mxu0 0.0
    %1156 = vmatpush1.msra.mxu0 0.0
    %1157 = vmatprep.subr.mxu0 0.0
    %1158 = vmatpush1.msra.mxu0 0.0
    %1159 = vmatprep.subr.mxu0 0.0
    %1160 = vmatpush1.msra.mxu0 0.0
    %1161 = vmatprep.subr.mxu0 0.0
    %1162 = vmatpush1.msra.mxu0 0.0
    %1163 = vmatprep.subr.mxu0 0.0
    %1164 = vmatpush1.msra.mxu0 0.0
    %1165 = vmatprep.subr.mxu0 0.0
    %1166 = vmatpush1.msra.mxu0 0.0
    %1167 = vmatprep.subr.mxu0 0.0
    %1168 = vmatpush1.msra.mxu0 %v297
    %1169 = vmatprep.subr.mxu0 0.0
    %1170 = vmatpush1.msra.mxu0 %v296
    %1171 = vmatprep.subr.mxu0 0.0
    %1172 = vmatpush1.msra.mxu0 %v295
    %1173 = vmatprep.subr.mxu0 0.0
    %1174 = vmatpush1.msra.mxu0 %v294
    %1175 = vmatprep.subr.mxu0 0.0
    %1176 = vmatpush2.msra.mxu0 0.0
    %1177 = vmatprep.subr.mxu0 0.0
    %1178 = vmatpush2.msra.mxu0 0.0
    %1179 = vmatprep.subr.mxu0 0.0
    %1180 = vmatpush2.msra.mxu0 0.0
    %1181 = vmatprep.subr.mxu0 0.0
    %1182 = vmatpush2.msra.mxu0 0.0
    %1183 = vmatprep.subr.mxu0 0.0
    %1184 = vmatpush2.msra.mxu0 0.0
    %1185 = vmatprep.subr.mxu0 0.0
    %1186 = vmatpush2.msra.mxu0 0.0
    %1187 = vmatprep.subr.mxu0 0.0
    %1188 = vmatpush2.msra.mxu0 0.0
    %1189 = vmatprep.subr.mxu0 0.0
    %1190 = vmatpush2.msra.mxu0 0.0
    %1191 = vmatprep.subr.mxu0 0.0
    %1192 = vmatpush2.msra.mxu0 0.0
    %1193 = vmatprep.subr.mxu0 0.0
    %1194 = vmatpush2.msra.mxu0 0.0
    %1195 = vmatprep.subr.mxu0 0.0
    %1196 = vmatpush2.msra.mxu0 0.0
    %1197 = vmatprep.subr.mxu0 0.0
    %1198 = vmatpush2.msra.mxu0 0.0
    %1199 = vmatprep.subr.mxu0 0.0
    %1200 = vmatpush2.msra.mxu0 0.0
    %1201 = vmatprep.subr.mxu0 0.0
    %1202 = vmatpush2.msra.mxu0 0.0
    %1203 = vmatprep.subr.mxu0 0.0
    %1204 = vmatpush2.msra.mxu0 0.0
    %1205 = vmatprep.subr.mxu0 0.0
    %1206 = vmatpush2.msra.mxu0 0.0
    %1207 = vmatprep.mubr.f32.mxu0 0.0
    %1208 = vmatmul.mubr.f32.gmra.mxu0 %v1141
    %v1209 = vpop.f32.mrf.mxu0
    %v1210 = vadd.f32 0.0, %v1209
    %v1211 = vpop.f32.mrf.mxu0
    %1212 = vdwg.mxu0
    %v1213 = vadd.f32 %v1139, %v1210
    %v1214 = vsel %vm140, %v1135, 0
    %1216 = vmatprep.subr.mxu0 0.0
    %1217 = vmatpush1.msra.mxu0 0.0
    %1218 = vmatprep.subr.mxu0 0.0
    %1219 = vmatpush1.msra.mxu0 0.0
    %1220 = vmatprep.subr.mxu0 0.0
    %1221 = vmatpush1.msra.mxu0 0.0
    %1222 = vmatprep.subr.mxu0 0.0
    %1223 = vmatpush1.msra.mxu0 0.0
    %1224 = vmatprep.subr.mxu0 0.0
    %1225 = vmatpush1.msra.mxu0 0.0
    %1226 = vmatprep.subr.mxu0 0.0
    %1227 = vmatpush1.msra.mxu0 0.0
    %1228 = vmatprep.subr.mxu0 0.0
    %1229 = vmatpush1.msra.mxu0 0.0
    %1230 = vmatprep.subr.mxu0 0.0
    %1231 = vmatpush1.msra.mxu0 0.0
    %1232 = vmatprep.subr.mxu0 0.0
    %1233 = vmatpush1.msra.mxu0 0.0
    %1234 = vmatprep.subr.mxu0 0.0
    %1235 = vmatpush1.msra.mxu0 0.0
    %1236 = vmatprep.subr.mxu0 0.0
    %1237 = vmatpush1.msra.mxu0 0.0
    %1238 = vmatprep.subr.mxu0 0.0
    %1239 = vmatpush1.msra.mxu0 0.0
    %1240 = vmatprep.subr.mxu0 0.0
    %1241 = vmatpush1.msra.mxu0 %v301
    %1242 = vmatprep.subr.mxu0 0.0
    %1243 = vmatpush1.msra.mxu0 %v300
    %1244 = vmatprep.subr.mxu0 0.0
    %1245 = vmatpush1.msra.mxu0 %v299
    %1246 = vmatprep.subr.mxu0 0.0
    %1247 = vmatpush1.msra.mxu0 %v298
    %1248 = vmatprep.subr.mxu0 0.0
    %1249 = vmatpush2.msra.mxu0 0.0
    %1250 = vmatprep.subr.mxu0 0.0
    %1251 = vmatpush2.msra.mxu0 0.0
    %1252 = vmatprep.subr.mxu0 0.0
    %1253 = vmatpush2.msra.mxu0 0.0
    %1254 = vmatprep.subr.mxu0 0.0
    %1255 = vmatpush2.msra.mxu0 0.0
    %1256 = vmatprep.subr.mxu0 0.0
    %1257 = vmatpush2.msra.mxu0 0.0
    %1258 = vmatprep.subr.mxu0 0.0
    %1259 = vmatpush2.msra.mxu0 0.0
    %1260 = vmatprep.subr.mxu0 0.0
    %1261 = vmatpush2.msra.mxu0 0.0
    %1262 = vmatprep.subr.mxu0 0.0
    %1263 = vmatpush2.msra.mxu0 0.0
    %1264 = vmatprep.subr.mxu0 0.0
    %1265 = vmatpush2.msra.mxu0 0.0
    %1266 = vmatprep.subr.mxu0 0.0
    %1267 = vmatpush2.msra.mxu0 0.0
    %1268 = vmatprep.subr.mxu0 0.0
    %1269 = vmatpush2.msra.mxu0 0.0
    %1270 = vmatprep.subr.mxu0 0.0
    %1271 = vmatpush2.msra.mxu0 0.0
    %1272 = vmatprep.subr.mxu0 0.0
    %1273 = vmatpush2.msra.mxu0 0.0
    %1274 = vmatprep.subr.mxu0 0.0
    %1275 = vmatpush2.msra.mxu0 0.0
    %1276 = vmatprep.subr.mxu0 0.0
    %1277 = vmatpush2.msra.mxu0 0.0
    %1278 = vmatprep.subr.mxu0 0.0
    %1279 = vmatpush2.msra.mxu0 0.0
    %1280 = vmatprep.mubr.f32.mxu0 0.0
    %1281 = vmatmul.mubr.f32.gmra.mxu0 %v1214
    %v1282 = vpop.f32.mrf.mxu0
    %v1283 = vadd.f32 0.0, %v1282
    %v1284 = vpop.f32.mrf.mxu0
    %1285 = vdwg.mxu0
    %v1286 = vadd.f32 %v1140, %v1283
    %v1287 = vxor.u32 %v1213, 2147483648
    %v1288 = vmul.f32 %v1287, 1.442695
    %v1289 = vpow.pop %v1288
    %v1290 = vadd.f32 %v1289, 1.0
    %v1291 = vrcp.pop %v1290
    %v1292 = vmul.f32 1.0, %v1291
    %v1293 = vtanh.pop %v1213
    %v1294 = vmul.f32 %v1292, %v1096
    %1296 = vrot.lane.b32.xlu0 %v1293, 64
    %v1297 = vpop.permute.xlu0 %1296
    %v1299 = vmul.f32 %v1292, %v1297
    %1301 = vrot.lane.b32.xlu0 %v1299, 32
    %v1302 = vpop.permute.xlu0 %1301
    %v1304 = vadd.f32 %v1294, %v1302
    %v1305 = vtanh.pop %v1304
    %1307 = vrot.lane.b32.xlu0 %v1305, 64
    %v1308 = vpop.permute.xlu0 %1307
    %v1310 = vmul.f32 %v1292, %v1308
    %v1311 = vxor.u32 %v1286, 2147483648
    %v1312 = vmul.f32 %v1311, 1.442695
    %v1313 = vpow.pop %v1312
    %v1314 = vadd.f32 %v1313, 1.0
    %v1315 = vrcp.pop %v1314
    %v1316 = vmul.f32 1.0, %v1315
    %v1317 = vtanh.pop %v1286
    %v1318 = vmul.f32 %v1316, %v1120
    %1320 = vrot.lane.b32.xlu0 %v1317, 64
    %v1321 = vpop.permute.xlu0 %1320
    %v1323 = vmul.f32 %v1316, %v1321
    %1325 = vrot.lane.b32.xlu0 %v1323, 32
    %v1326 = vpop.permute.xlu0 %1325
    %v1328 = vadd.f32 %v1318, %v1326
    %v1329 = vtanh.pop %v1328
    %1331 = vrot.lane.b32.xlu0 %v1329, 64
    %v1332 = vpop.permute.xlu0 %1331
    %v1334 = vmul.f32 %v1316, %v1332
    %1336 = vrot.lane.b32.xlu0 %v1310, 32
    %v1337 = vpop.permute.xlu0 %1336
    %s1339 = scalar_lea.vmem [#allocation3], 32
    %1340 = vst.msk [vmem:[%s1339] sm:$0xff] %vm140, %v1337
    %1342 = vrot.lane.b32.xlu0 %v1334, 32
    %v1343 = vpop.permute.xlu0 %1342
    %s1345 = scalar_lea.vmem [#allocation4], 24
    %1346 = vst.msk [vmem:[%s1345] sm:$0xff] %vm140, %v1343
    %v1347 = vld [vmem:[%s721] sm:$0xff]
    %v1348 = vld [vmem:[%s719 + $0x8] sm:$0xff]
    %v1349 = vsel %vm140, %v1337, 0
    %1351 = vmatprep.subr.mxu0 0.0
    %1352 = vmatpush1.msra.mxu0 0.0
    %1353 = vmatprep.subr.mxu0 0.0
    %1354 = vmatpush1.msra.mxu0 0.0
    %1355 = vmatprep.subr.mxu0 0.0
    %1356 = vmatpush1.msra.mxu0 0.0
    %1357 = vmatprep.subr.mxu0 0.0
    %1358 = vmatpush1.msra.mxu0 0.0
    %1359 = vmatprep.subr.mxu0 0.0
    %1360 = vmatpush1.msra.mxu0 0.0
    %1361 = vmatprep.subr.mxu0 0.0
    %1362 = vmatpush1.msra.mxu0 0.0
    %1363 = vmatprep.subr.mxu0 0.0
    %1364 = vmatpush1.msra.mxu0 0.0
    %1365 = vmatprep.subr.mxu0 0.0
    %1366 = vmatpush1.msra.mxu0 0.0
    %1367 = vmatprep.subr.mxu0 0.0
    %1368 = vmatpush1.msra.mxu0 0.0
    %1369 = vmatprep.subr.mxu0 0.0
    %1370 = vmatpush1.msra.mxu0 0.0
    %1371 = vmatprep.subr.mxu0 0.0
    %1372 = vmatpush1.msra.mxu0 0.0
    %1373 = vmatprep.subr.mxu0 0.0
    %1374 = vmatpush1.msra.mxu0 0.0
    %1375 = vmatprep.subr.mxu0 0.0
    %1376 = vmatpush1.msra.mxu0 %v297
    %1377 = vmatprep.subr.mxu0 0.0
    %1378 = vmatpush1.msra.mxu0 %v296
    %1379 = vmatprep.subr.mxu0 0.0
    %1380 = vmatpush1.msra.mxu0 %v295
    %1381 = vmatprep.subr.mxu0 0.0
    %1382 = vmatpush1.msra.mxu0 %v294
    %1383 = vmatprep.subr.mxu0 0.0
    %1384 = vmatpush2.msra.mxu0 0.0
    %1385 = vmatprep.subr.mxu0 0.0
    %1386 = vmatpush2.msra.mxu0 0.0
    %1387 = vmatprep.subr.mxu0 0.0
    %1388 = vmatpush2.msra.mxu0 0.0
    %1389 = vmatprep.subr.mxu0 0.0
    %1390 = vmatpush2.msra.mxu0 0.0
    %1391 = vmatprep.subr.mxu0 0.0
    %1392 = vmatpush2.msra.mxu0 0.0
    %1393 = vmatprep.subr.mxu0 0.0
    %1394 = vmatpush2.msra.mxu0 0.0
    %1395 = vmatprep.subr.mxu0 0.0
    %1396 = vmatpush2.msra.mxu0 0.0
    %1397 = vmatprep.subr.mxu0 0.0
    %1398 = vmatpush2.msra.mxu0 0.0
    %1399 = vmatprep.subr.mxu0 0.0
    %1400 = vmatpush2.msra.mxu0 0.0
    %1401 = vmatprep.subr.mxu0 0.0
    %1402 = vmatpush2.msra.mxu0 0.0
    %1403 = vmatprep.subr.mxu0 0.0
    %1404 = vmatpush2.msra.mxu0 0.0
    %1405 = vmatprep.subr.mxu0 0.0
    %1406 = vmatpush2.msra.mxu0 0.0
    %1407 = vmatprep.subr.mxu0 0.0
    %1408 = vmatpush2.msra.mxu0 0.0
    %1409 = vmatprep.subr.mxu0 0.0
    %1410 = vmatpush2.msra.mxu0 0.0
    %1411 = vmatprep.subr.mxu0 0.0
    %1412 = vmatpush2.msra.mxu0 0.0
    %1413 = vmatprep.subr.mxu0 0.0
    %1414 = vmatpush2.msra.mxu0 0.0
    %1415 = vmatprep.mubr.f32.mxu0 0.0
    %1416 = vmatmul.mubr.f32.gmra.mxu0 %v1349
    %v1417 = vpop.f32.mrf.mxu0
    %v1418 = vadd.f32 0.0, %v1417
    %v1419 = vpop.f32.mrf.mxu0
    %1420 = vdwg.mxu0
    %v1421 = vadd.f32 %v1347, %v1418
    %v1422 = vsel %vm140, %v1343, 0
    %1424 = vmatprep.subr.mxu0 0.0
    %1425 = vmatpush1.msra.mxu0 0.0
    %1426 = vmatprep.subr.mxu0 0.0
    %1427 = vmatpush1.msra.mxu0 0.0
    %1428 = vmatprep.subr.mxu0 0.0
    %1429 = vmatpush1.msra.mxu0 0.0
    %1430 = vmatprep.subr.mxu0 0.0
    %1431 = vmatpush1.msra.mxu0 0.0
    %1432 = vmatprep.subr.mxu0 0.0
    %1433 = vmatpush1.msra.mxu0 0.0
    %1434 = vmatprep.subr.mxu0 0.0
    %1435 = vmatpush1.msra.mxu0 0.0
    %1436 = vmatprep.subr.mxu0 0.0
    %1437 = vmatpush1.msra.mxu0 0.0
    %1438 = vmatprep.subr.mxu0 0.0
    %1439 = vmatpush1.msra.mxu0 0.0
    %1440 = vmatprep.subr.mxu0 0.0
    %1441 = vmatpush1.msra.mxu0 0.0
    %1442 = vmatprep.subr.mxu0 0.0
    %1443 = vmatpush1.msra.mxu0 0.0
    %1444 = vmatprep.subr.mxu0 0.0
    %1445 = vmatpush1.msra.mxu0 0.0
    %1446 = vmatprep.subr.mxu0 0.0
    %1447 = vmatpush1.msra.mxu0 0.0
    %1448 = vmatprep.subr.mxu0 0.0
    %1449 = vmatpush1.msra.mxu0 %v301
    %1450 = vmatprep.subr.mxu0 0.0
    %1451 = vmatpush1.msra.mxu0 %v300
    %1452 = vmatprep.subr.mxu0 0.0
    %1453 = vmatpush1.msra.mxu0 %v299
    %1454 = vmatprep.subr.mxu0 0.0
    %1455 = vmatpush1.msra.mxu0 %v298
    %1456 = vmatprep.subr.mxu0 0.0
    %1457 = vmatpush2.msra.mxu0 0.0
    %1458 = vmatprep.subr.mxu0 0.0
    %1459 = vmatpush2.msra.mxu0 0.0
    %1460 = vmatprep.subr.mxu0 0.0
    %1461 = vmatpush2.msra.mxu0 0.0
    %1462 = vmatprep.subr.mxu0 0.0
    %1463 = vmatpush2.msra.mxu0 0.0
    %1464 = vmatprep.subr.mxu0 0.0
    %1465 = vmatpush2.msra.mxu0 0.0
    %1466 = vmatprep.subr.mxu0 0.0
    %1467 = vmatpush2.msra.mxu0 0.0
    %1468 = vmatprep.subr.mxu0 0.0
    %1469 = vmatpush2.msra.mxu0 0.0
    %1470 = vmatprep.subr.mxu0 0.0
    %1471 = vmatpush2.msra.mxu0 0.0
    %1472 = vmatprep.subr.mxu0 0.0
    %1473 = vmatpush2.msra.mxu0 0.0
    %1474 = vmatprep.subr.mxu0 0.0
    %1475 = vmatpush2.msra.mxu0 0.0
    %1476 = vmatprep.subr.mxu0 0.0
    %1477 = vmatpush2.msra.mxu0 0.0
    %1478 = vmatprep.subr.mxu0 0.0
    %1479 = vmatpush2.msra.mxu0 0.0
    %1480 = vmatprep.subr.mxu0 0.0
    %1481 = vmatpush2.msra.mxu0 0.0
    %1482 = vmatprep.subr.mxu0 0.0
    %1483 = vmatpush2.msra.mxu0 0.0
    %1484 = vmatprep.subr.mxu0 0.0
    %1485 = vmatpush2.msra.mxu0 0.0
    %1486 = vmatprep.subr.mxu0 0.0
    %1487 = vmatpush2.msra.mxu0 0.0
    %1488 = vmatprep.mubr.f32.mxu0 0.0
    %1489 = vmatmul.mubr.f32.gmra.mxu0 %v1422
    %v1490 = vpop.f32.mrf.mxu0
    %v1491 = vadd.f32 0.0, %v1490
    %v1492 = vpop.f32.mrf.mxu0
    %1493 = vdwg.mxu0
    %v1494 = vadd.f32 %v1348, %v1491
    %v1495 = vxor.u32 %v1421, 2147483648
    %v1496 = vmul.f32 %v1495, 1.442695
    %v1497 = vpow.pop %v1496
    %v1498 = vadd.f32 %v1497, 1.0
    %v1499 = vrcp.pop %v1498
    %v1500 = vmul.f32 1.0, %v1499
    %v1501 = vtanh.pop %v1421
    %v1502 = vmul.f32 %v1500, %v1304
    %1504 = vrot.lane.b32.xlu0 %v1501, 64
    %v1505 = vpop.permute.xlu0 %1504
    %v1507 = vmul.f32 %v1500, %v1505
    %1509 = vrot.lane.b32.xlu0 %v1507, 32
    %v1510 = vpop.permute.xlu0 %1509
    %v1512 = vadd.f32 %v1502, %v1510
    %v1513 = vtanh.pop %v1512
    %1515 = vrot.lane.b32.xlu0 %v1513, 64
    %v1516 = vpop.permute.xlu0 %1515
    %v1518 = vmul.f32 %v1500, %v1516
    %v1519 = vxor.u32 %v1494, 2147483648
    %v1520 = vmul.f32 %v1519, 1.442695
    %v1521 = vpow.pop %v1520
    %v1522 = vadd.f32 %v1521, 1.0
    %v1523 = vrcp.pop %v1522
    %v1524 = vmul.f32 1.0, %v1523
    %v1525 = vtanh.pop %v1494
    %v1526 = vmul.f32 %v1524, %v1328
    %1528 = vrot.lane.b32.xlu0 %v1525, 64
    %v1529 = vpop.permute.xlu0 %1528
    %v1531 = vmul.f32 %v1524, %v1529
    %1533 = vrot.lane.b32.xlu0 %v1531, 32
    %v1534 = vpop.permute.xlu0 %1533
    %v1536 = vadd.f32 %v1526, %v1534
    %v1537 = vtanh.pop %v1536
    %1539 = vrot.lane.b32.xlu0 %v1537, 64
    %v1540 = vpop.permute.xlu0 %1539
    %v1542 = vmul.f32 %v1524, %v1540
    %1544 = vrot.lane.b32.xlu0 %v1518, 32
    %v1545 = vpop.permute.xlu0 %1544
    %s1547 = scalar_lea.vmem [#allocation3], 40
    %1548 = vst.msk [vmem:[%s1547] sm:$0xff] %vm140, %v1545
    %1550 = vrot.lane.b32.xlu0 %v1542, 32
    %v1551 = vpop.permute.xlu0 %1550
    %s1553 = scalar_lea.vmem [#allocation4], 16
    %1554 = vst.msk [vmem:[%s1553] sm:$0xff] %vm140, %v1551
    %v1555 = vld [vmem:[%s511] sm:$0xff]
    %v1556 = vld [vmem:[%s509 + $0x8] sm:$0xff]
    %v1557 = vsel %vm140, %v1545, 0
    %1559 = vmatprep.subr.mxu0 0.0
    %1560 = vmatpush1.msra.mxu0 0.0
    %1561 = vmatprep.subr.mxu0 0.0
    %1562 = vmatpush1.msra.mxu0 0.0
    %1563 = vmatprep.subr.mxu0 0.0
    %1564 = vmatpush1.msra.mxu0 0.0
    %1565 = vmatprep.subr.mxu0 0.0
    %1566 = vmatpush1.msra.mxu0 0.0
    %1567 = vmatprep.subr.mxu0 0.0
    %1568 = vmatpush1.msra.mxu0 0.0
    %1569 = vmatprep.subr.mxu0 0.0
    %1570 = vmatpush1.msra.mxu0 0.0
    %1571 = vmatprep.subr.mxu0 0.0
    %1572 = vmatpush1.msra.mxu0 0.0
    %1573 = vmatprep.subr.mxu0 0.0
    %1574 = vmatpush1.msra.mxu0 0.0
    %1575 = vmatprep.subr.mxu0 0.0
    %1576 = vmatpush1.msra.mxu0 0.0
    %1577 = vmatprep.subr.mxu0 0.0
    %1578 = vmatpush1.msra.mxu0 0.0
    %1579 = vmatprep.subr.mxu0 0.0
    %1580 = vmatpush1.msra.mxu0 0.0
    %1581 = vmatprep.subr.mxu0 0.0
    %1582 = vmatpush1.msra.mxu0 0.0
    %1583 = vmatprep.subr.mxu0 0.0
    %1584 = vmatpush1.msra.mxu0 %v297
    %1585 = vmatprep.subr.mxu0 0.0
    %1586 = vmatpush1.msra.mxu0 %v296
    %1587 = vmatprep.subr.mxu0 0.0
    %1588 = vmatpush1.msra.mxu0 %v295
    %1589 = vmatprep.subr.mxu0 0.0
    %1590 = vmatpush1.msra.mxu0 %v294
    %1591 = vmatprep.subr.mxu0 0.0
    %1592 = vmatpush2.msra.mxu0 0.0
    %1593 = vmatprep.subr.mxu0 0.0
    %1594 = vmatpush2.msra.mxu0 0.0
    %1595 = vmatprep.subr.mxu0 0.0
    %1596 = vmatpush2.msra.mxu0 0.0
    %1597 = vmatprep.subr.mxu0 0.0
    %1598 = vmatpush2.msra.mxu0 0.0
    %1599 = vmatprep.subr.mxu0 0.0
    %1600 = vmatpush2.msra.mxu0 0.0
    %1601 = vmatprep.subr.mxu0 0.0
    %1602 = vmatpush2.msra.mxu0 0.0
    %1603 = vmatprep.subr.mxu0 0.0
    %1604 = vmatpush2.msra.mxu0 0.0
    %1605 = vmatprep.subr.mxu0 0.0
    %1606 = vmatpush2.msra.mxu0 0.0
    %1607 = vmatprep.subr.mxu0 0.0
    %1608 = vmatpush2.msra.mxu0 0.0
    %1609 = vmatprep.subr.mxu0 0.0
    %1610 = vmatpush2.msra.mxu0 0.0
    %1611 = vmatprep.subr.mxu0 0.0
    %1612 = vmatpush2.msra.mxu0 0.0
    %1613 = vmatprep.subr.mxu0 0.0
    %1614 = vmatpush2.msra.mxu0 0.0
    %1615 = vmatprep.subr.mxu0 0.0
    %1616 = vmatpush2.msra.mxu0 0.0
    %1617 = vmatprep.subr.mxu0 0.0
    %1618 = vmatpush2.msra.mxu0 0.0
    %1619 = vmatprep.subr.mxu0 0.0
    %1620 = vmatpush2.msra.mxu0 0.0
    %1621 = vmatprep.subr.mxu0 0.0
    %1622 = vmatpush2.msra.mxu0 0.0
    %1623 = vmatprep.mubr.f32.mxu0 0.0
    %1624 = vmatmul.mubr.f32.gmra.mxu0 %v1557
    %v1625 = vpop.f32.mrf.mxu0
    %v1626 = vadd.f32 0.0, %v1625
    %v1627 = vpop.f32.mrf.mxu0
    %1628 = vdwg.mxu0
    %v1629 = vadd.f32 %v1555, %v1626
    %v1630 = vsel %vm140, %v1551, 0
    %1632 = vmatprep.subr.mxu0 0.0
    %1633 = vmatpush1.msra.mxu0 0.0
    %1634 = vmatprep.subr.mxu0 0.0
    %1635 = vmatpush1.msra.mxu0 0.0
    %1636 = vmatprep.subr.mxu0 0.0
    %1637 = vmatpush1.msra.mxu0 0.0
    %1638 = vmatprep.subr.mxu0 0.0
    %1639 = vmatpush1.msra.mxu0 0.0
    %1640 = vmatprep.subr.mxu0 0.0
    %1641 = vmatpush1.msra.mxu0 0.0
    %1642 = vmatprep.subr.mxu0 0.0
    %1643 = vmatpush1.msra.mxu0 0.0
    %1644 = vmatprep.subr.mxu0 0.0
    %1645 = vmatpush1.msra.mxu0 0.0
    %1646 = vmatprep.subr.mxu0 0.0
    %1647 = vmatpush1.msra.mxu0 0.0
    %1648 = vmatprep.subr.mxu0 0.0
    %1649 = vmatpush1.msra.mxu0 0.0
    %1650 = vmatprep.subr.mxu0 0.0
    %1651 = vmatpush1.msra.mxu0 0.0
    %1652 = vmatprep.subr.mxu0 0.0
    %1653 = vmatpush1.msra.mxu0 0.0
    %1654 = vmatprep.subr.mxu0 0.0
    %1655 = vmatpush1.msra.mxu0 0.0
    %1656 = vmatprep.subr.mxu0 0.0
    %1657 = vmatpush1.msra.mxu0 %v301
    %1658 = vmatprep.subr.mxu0 0.0
    %1659 = vmatpush1.msra.mxu0 %v300
    %1660 = vmatprep.subr.mxu0 0.0
    %1661 = vmatpush1.msra.mxu0 %v299
    %1662 = vmatprep.subr.mxu0 0.0
    %1663 = vmatpush1.msra.mxu0 %v298
    %1664 = vmatprep.subr.mxu0 0.0
    %1665 = vmatpush2.msra.mxu0 0.0
    %1666 = vmatprep.subr.mxu0 0.0
    %1667 = vmatpush2.msra.mxu0 0.0
    %1668 = vmatprep.subr.mxu0 0.0
    %1669 = vmatpush2.msra.mxu0 0.0
    %1670 = vmatprep.subr.mxu0 0.0
    %1671 = vmatpush2.msra.mxu0 0.0
    %1672 = vmatprep.subr.mxu0 0.0
    %1673 = vmatpush2.msra.mxu0 0.0
    %1674 = vmatprep.subr.mxu0 0.0
    %1675 = vmatpush2.msra.mxu0 0.0
    %1676 = vmatprep.subr.mxu0 0.0
    %1677 = vmatpush2.msra.mxu0 0.0
    %1678 = vmatprep.subr.mxu0 0.0
    %1679 = vmatpush2.msra.mxu0 0.0
    %1680 = vmatprep.subr.mxu0 0.0
    %1681 = vmatpush2.msra.mxu0 0.0
    %1682 = vmatprep.subr.mxu0 0.0
    %1683 = vmatpush2.msra.mxu0 0.0
    %1684 = vmatprep.subr.mxu0 0.0
    %1685 = vmatpush2.msra.mxu0 0.0
    %1686 = vmatprep.subr.mxu0 0.0
    %1687 = vmatpush2.msra.mxu0 0.0
    %1688 = vmatprep.subr.mxu0 0.0
    %1689 = vmatpush2.msra.mxu0 0.0
    %1690 = vmatprep.subr.mxu0 0.0
    %1691 = vmatpush2.msra.mxu0 0.0
    %1692 = vmatprep.subr.mxu0 0.0
    %1693 = vmatpush2.msra.mxu0 0.0
    %1694 = vmatprep.subr.mxu0 0.0
    %1695 = vmatpush2.msra.mxu0 0.0
    %1696 = vmatprep.mubr.f32.mxu0 0.0
    %1697 = vmatmul.mubr.f32.gmra.mxu0 %v1630
    %v1698 = vpop.f32.mrf.mxu0
    %v1699 = vadd.f32 0.0, %v1698
    %v1700 = vpop.f32.mrf.mxu0
    %1701 = vdwg.mxu0
    %v1702 = vadd.f32 %v1556, %v1699
    %v1703 = vxor.u32 %v1629, 2147483648
    %v1704 = vmul.f32 %v1703, 1.442695
    %v1705 = vpow.pop %v1704
    %v1706 = vadd.f32 %v1705, 1.0
    %v1707 = vrcp.pop %v1706
    %v1708 = vmul.f32 1.0, %v1707
    %v1709 = vtanh.pop %v1629
    %v1710 = vmul.f32 %v1708, %v1512
    %1712 = vrot.lane.b32.xlu0 %v1709, 64
    %v1713 = vpop.permute.xlu0 %1712
    %v1715 = vmul.f32 %v1708, %v1713
    %1717 = vrot.lane.b32.xlu0 %v1715, 32
    %v1718 = vpop.permute.xlu0 %1717
    %v1720 = vadd.f32 %v1710, %v1718
    %v1721 = vtanh.pop %v1720
    %1723 = vrot.lane.b32.xlu0 %v1721, 64
    %v1724 = vpop.permute.xlu0 %1723
    %v1726 = vmul.f32 %v1708, %v1724
    %v1727 = vxor.u32 %v1702, 2147483648
    %v1728 = vmul.f32 %v1727, 1.442695
    %v1729 = vpow.pop %v1728
    %v1730 = vadd.f32 %v1729, 1.0
    %v1731 = vrcp.pop %v1730
    %v1732 = vmul.f32 1.0, %v1731
    %v1733 = vtanh.pop %v1702
    %v1734 = vmul.f32 %v1732, %v1536
    %1736 = vrot.lane.b32.xlu0 %v1733, 64
    %v1737 = vpop.permute.xlu0 %1736
    %v1739 = vmul.f32 %v1732, %v1737
    %1741 = vrot.lane.b32.xlu0 %v1739, 32
    %v1742 = vpop.permute.xlu0 %1741
    %v1744 = vadd.f32 %v1734, %v1742
    %v1745 = vtanh.pop %v1744
    %1747 = vrot.lane.b32.xlu0 %v1745, 64
    %v1748 = vpop.permute.xlu0 %1747
    %v1750 = vmul.f32 %v1732, %v1748
    %1752 = vrot.lane.b32.xlu0 %v1726, 32
    %v1753 = vpop.permute.xlu0 %1752
    %s1755 = scalar_lea.vmem [#allocation3], 48
    %1756 = vst.msk [vmem:[%s1755] sm:$0xff] %vm140, %v1753
    %1758 = vrot.lane.b32.xlu0 %v1750, 32
    %v1759 = vpop.permute.xlu0 %1758
    %s1761 = scalar_lea.vmem [#allocation4], 8
    %1762 = vst.msk [vmem:[%s1761] sm:$0xff] %vm140, %v1759
    %v1763 = vld [vmem:[%s303] sm:$0xff]
    %v1764 = vld [vmem:[#allocation2 + $0x8] sm:$0xff]
    %v1765 = vsel %vm140, %v1753, 0
    %1767 = vmatprep.subr.mxu0 0.0
    %1768 = vmatpush1.msra.mxu0 0.0
    %1769 = vmatprep.subr.mxu0 0.0
    %1770 = vmatpush1.msra.mxu0 0.0
    %1771 = vmatprep.subr.mxu0 0.0
    %1772 = vmatpush1.msra.mxu0 0.0
    %1773 = vmatprep.subr.mxu0 0.0
    %1774 = vmatpush1.msra.mxu0 0.0
    %1775 = vmatprep.subr.mxu0 0.0
    %1776 = vmatpush1.msra.mxu0 0.0
    %1777 = vmatprep.subr.mxu0 0.0
    %1778 = vmatpush1.msra.mxu0 0.0
    %1779 = vmatprep.subr.mxu0 0.0
    %1780 = vmatpush1.msra.mxu0 0.0
    %1781 = vmatprep.subr.mxu0 0.0
    %1782 = vmatpush1.msra.mxu0 0.0
    %1783 = vmatprep.subr.mxu0 0.0
    %1784 = vmatpush1.msra.mxu0 0.0
    %1785 = vmatprep.subr.mxu0 0.0
    %1786 = vmatpush1.msra.mxu0 0.0
    %1787 = vmatprep.subr.mxu0 0.0
    %1788 = vmatpush1.msra.mxu0 0.0
    %1789 = vmatprep.subr.mxu0 0.0
    %1790 = vmatpush1.msra.mxu0 0.0
    %1791 = vmatprep.subr.mxu0 0.0
    %1792 = vmatpush1.msra.mxu0 %v297
    %1793 = vmatprep.subr.mxu0 0.0
    %1794 = vmatpush1.msra.mxu0 %v296
    %1795 = vmatprep.subr.mxu0 0.0
    %1796 = vmatpush1.msra.mxu0 %v295
    %1797 = vmatprep.subr.mxu0 0.0
    %1798 = vmatpush1.msra.mxu0 %v294
    %1799 = vmatprep.subr.mxu0 0.0
    %1800 = vmatpush2.msra.mxu0 0.0
    %1801 = vmatprep.subr.mxu0 0.0
    %1802 = vmatpush2.msra.mxu0 0.0
    %1803 = vmatprep.subr.mxu0 0.0
    %1804 = vmatpush2.msra.mxu0 0.0
    %1805 = vmatprep.subr.mxu0 0.0
    %1806 = vmatpush2.msra.mxu0 0.0
    %1807 = vmatprep.subr.mxu0 0.0
    %1808 = vmatpush2.msra.mxu0 0.0
    %1809 = vmatprep.subr.mxu0 0.0
    %1810 = vmatpush2.msra.mxu0 0.0
    %1811 = vmatprep.subr.mxu0 0.0
    %1812 = vmatpush2.msra.mxu0 0.0
    %1813 = vmatprep.subr.mxu0 0.0
    %1814 = vmatpush2.msra.mxu0 0.0
    %1815 = vmatprep.subr.mxu0 0.0
    %1816 = vmatpush2.msra.mxu0 0.0
    %1817 = vmatprep.subr.mxu0 0.0
    %1818 = vmatpush2.msra.mxu0 0.0
    %1819 = vmatprep.subr.mxu0 0.0
    %1820 = vmatpush2.msra.mxu0 0.0
    %1821 = vmatprep.subr.mxu0 0.0
    %1822 = vmatpush2.msra.mxu0 0.0
    %1823 = vmatprep.subr.mxu0 0.0
    %1824 = vmatpush2.msra.mxu0 0.0
    %1825 = vmatprep.subr.mxu0 0.0
    %1826 = vmatpush2.msra.mxu0 0.0
    %1827 = vmatprep.subr.mxu0 0.0
    %1828 = vmatpush2.msra.mxu0 0.0
    %1829 = vmatprep.subr.mxu0 0.0
    %1830 = vmatpush2.msra.mxu0 0.0
    %1831 = vmatprep.mubr.f32.mxu0 0.0
    %1832 = vmatmul.mubr.f32.gmra.mxu0 %v1765
    %v1833 = vpop.f32.mrf.mxu0
    %v1834 = vadd.f32 0.0, %v1833
    %v1835 = vpop.f32.mrf.mxu0
    %1836 = vdwg.mxu0
    %v1837 = vadd.f32 %v1763, %v1834
    %v1838 = vsel %vm140, %v1759, 0
    %1840 = vmatprep.subr.mxu0 0.0
    %1841 = vmatpush1.msra.mxu0 0.0
    %1842 = vmatprep.subr.mxu0 0.0
    %1843 = vmatpush1.msra.mxu0 0.0
    %1844 = vmatprep.subr.mxu0 0.0
    %1845 = vmatpush1.msra.mxu0 0.0
    %1846 = vmatprep.subr.mxu0 0.0
    %1847 = vmatpush1.msra.mxu0 0.0
    %1848 = vmatprep.subr.mxu0 0.0
    %1849 = vmatpush1.msra.mxu0 0.0
    %1850 = vmatprep.subr.mxu0 0.0
    %1851 = vmatpush1.msra.mxu0 0.0
    %1852 = vmatprep.subr.mxu0 0.0
    %1853 = vmatpush1.msra.mxu0 0.0
    %1854 = vmatprep.subr.mxu0 0.0
    %1855 = vmatpush1.msra.mxu0 0.0
    %1856 = vmatprep.subr.mxu0 0.0
    %1857 = vmatpush1.msra.mxu0 0.0
    %1858 = vmatprep.subr.mxu0 0.0
    %1859 = vmatpush1.msra.mxu0 0.0
    %1860 = vmatprep.subr.mxu0 0.0
    %1861 = vmatpush1.msra.mxu0 0.0
    %1862 = vmatprep.subr.mxu0 0.0
    %1863 = vmatpush1.msra.mxu0 0.0
    %1864 = vmatprep.subr.mxu0 0.0
    %1865 = vmatpush1.msra.mxu0 %v301
    %1866 = vmatprep.subr.mxu0 0.0
    %1867 = vmatpush1.msra.mxu0 %v300
    %1868 = vmatprep.subr.mxu0 0.0
    %1869 = vmatpush1.msra.mxu0 %v299
    %1870 = vmatprep.subr.mxu0 0.0
    %1871 = vmatpush1.msra.mxu0 %v298
    %1872 = vmatprep.subr.mxu0 0.0
    %1873 = vmatpush2.msra.mxu0 0.0
    %1874 = vmatprep.subr.mxu0 0.0
    %1875 = vmatpush2.msra.mxu0 0.0
    %1876 = vmatprep.subr.mxu0 0.0
    %1877 = vmatpush2.msra.mxu0 0.0
    %1878 = vmatprep.subr.mxu0 0.0
    %1879 = vmatpush2.msra.mxu0 0.0
    %1880 = vmatprep.subr.mxu0 0.0
    %1881 = vmatpush2.msra.mxu0 0.0
    %1882 = vmatprep.subr.mxu0 0.0
    %1883 = vmatpush2.msra.mxu0 0.0
    %1884 = vmatprep.subr.mxu0 0.0
    %1885 = vmatpush2.msra.mxu0 0.0
    %1886 = vmatprep.subr.mxu0 0.0
    %1887 = vmatpush2.msra.mxu0 0.0
    %1888 = vmatprep.subr.mxu0 0.0
    %1889 = vmatpush2.msra.mxu0 0.0
    %1890 = vmatprep.subr.mxu0 0.0
    %1891 = vmatpush2.msra.mxu0 0.0
    %1892 = vmatprep.subr.mxu0 0.0
    %1893 = vmatpush2.msra.mxu0 0.0
    %1894 = vmatprep.subr.mxu0 0.0
    %1895 = vmatpush2.msra.mxu0 0.0
    %1896 = vmatprep.subr.mxu0 0.0
    %1897 = vmatpush2.msra.mxu0 0.0
    %1898 = vmatprep.subr.mxu0 0.0
    %1899 = vmatpush2.msra.mxu0 0.0
    %1900 = vmatprep.subr.mxu0 0.0
    %1901 = vmatpush2.msra.mxu0 0.0
    %1902 = vmatprep.subr.mxu0 0.0
    %1903 = vmatpush2.msra.mxu0 0.0
    %1904 = vmatprep.mubr.f32.mxu0 0.0
    %1905 = vmatmul.mubr.f32.gmra.mxu0 %v1838
    %v1906 = vpop.f32.mrf.mxu0
    %v1907 = vadd.f32 0.0, %v1906
    %v1908 = vpop.f32.mrf.mxu0
    %1909 = vdwg.mxu0
    %v1910 = vadd.f32 %v1764, %v1907
    %v1911 = vxor.u32 %v1837, 2147483648
    %v1912 = vmul.f32 %v1911, 1.442695
    %v1913 = vpow.pop %v1912
    %v1914 = vadd.f32 %v1913, 1.0
    %v1915 = vrcp.pop %v1914
    %v1916 = vmul.f32 1.0, %v1915
    %v1917 = vtanh.pop %v1837
    %v1918 = vmul.f32 %v1916, %v1720
    %1920 = vrot.lane.b32.xlu0 %v1917, 64
    %v1921 = vpop.permute.xlu0 %1920
    %v1923 = vmul.f32 %v1916, %v1921
    %1925 = vrot.lane.b32.xlu0 %v1923, 32
    %v1926 = vpop.permute.xlu0 %1925
    %v1928 = vadd.f32 %v1918, %v1926
    %v1929 = vtanh.pop %v1928
    %1931 = vrot.lane.b32.xlu0 %v1929, 64
    %v1932 = vpop.permute.xlu0 %1931
    %v1934 = vmul.f32 %v1916, %v1932
    %v1935 = vxor.u32 %v1910, 2147483648
    %v1936 = vmul.f32 %v1935, 1.442695
    %v1937 = vpow.pop %v1936
    %v1938 = vadd.f32 %v1937, 1.0
    %v1939 = vrcp.pop %v1938
    %v1940 = vmul.f32 1.0, %v1939
    %v1941 = vtanh.pop %v1910
    %v1942 = vmul.f32 %v1940, %v1744
    %1944 = vrot.lane.b32.xlu0 %v1941, 64
    %v1945 = vpop.permute.xlu0 %1944
    %v1947 = vmul.f32 %v1940, %v1945
    %1949 = vrot.lane.b32.xlu0 %v1947, 32
    %v1950 = vpop.permute.xlu0 %1949
    %v1952 = vadd.f32 %v1942, %v1950
    %v1953 = vtanh.pop %v1952
    %1955 = vrot.lane.b32.xlu0 %v1953, 64
    %v1956 = vpop.permute.xlu0 %1955
    %v1958 = vmul.f32 %v1940, %v1956
    %1960 = vrot.lane.b32.xlu0 %v1934, 32
    %v1961 = vpop.permute.xlu0 %1960
    %s1963 = scalar_lea.vmem [#allocation3], 56
    %1964 = vst.msk [vmem:[%s1963] sm:$0xff] %vm140, %v1961
    %1966 = vrot.lane.b32.xlu0 %v1958, 32
    %v1967 = vpop.permute.xlu0 %1966
    %1969 = vst.msk [vmem:[#allocation4] sm:$0xff] %vm140, %v1967
    %v1970 = vld [vmem:[#allocation3] sm:$0xff]
    %v1971 = vld [vmem:[#allocation3 + $0x8] sm:$0xff]
    %v1972 = vld [vmem:[#allocation3 + $0x10] sm:$0xff]
    %v1973 = vld [vmem:[#allocation3 + $0x18] sm:$0xff]
    %v1974 = vld [vmem:[#allocation3 + $0x20] sm:$0xff]
    %v1975 = vld [vmem:[#allocation3 + $0x28] sm:$0xff]
    %v1976 = vld [vmem:[#allocation3 + $0x30] sm:$0xff]
    %v1977 = vld [vmem:[#allocation3 + $0x38] sm:$0xff]
    %v1978 = vld [vmem:[#allocation4] sm:$0xff]
    %v1979 = vld [vmem:[#allocation4 + $0x8] sm:$0xff]
    %v1980 = vld [vmem:[#allocation4 + $0x10] sm:$0xff]
    %v1981 = vld [vmem:[#allocation4 + $0x18] sm:$0xff]
    %v1982 = vld [vmem:[#allocation4 + $0x20] sm:$0xff]
    %v1983 = vld [vmem:[#allocation4 + $0x28] sm:$0xff]
    %v1984 = vld [vmem:[#allocation4 + $0x30] sm:$0xff]
    %v1985 = vld [vmem:[#allocation4 + $0x38] sm:$0xff]
    %v1986 = vld [vmem:[#allocation13] sm:$0xff]
    %v1987 = vld [vmem:[#allocation13 + $0x8] sm:$0xff]
    %v1988 = vld [vmem:[#allocation13 + $0x10] sm:$0xff]
    %v1989 = vld [vmem:[#allocation13 + $0x18] sm:$0xff]
    %v1990 = vld [vmem:[#allocation14] sm:$0xff]
    %v1991 = vld [vmem:[#allocation14 + $0x8] sm:$0xff]
    %v1992 = vld [vmem:[#allocation14 + $0x10] sm:$0xff]
    %v1993 = vld [vmem:[#allocation14 + $0x18] sm:$0xff]
    %v1995 = vsel %vm140, %v1978, 0
    %v1998 = vsel %vm140, %v1979, 0
    %v2001 = vsel %vm140, %v1980, 0
    %v2004 = vsel %vm140, %v1981, 0
    %v2007 = vsel %vm140, %v1982, 0
    %v2010 = vsel %vm140, %v1983, 0
    %v2013 = vsel %vm140, %v1984, 0
    %v2016 = vsel %vm140, %v1985, 0
    %2018 = vmatprep.subr.mxu0 0.0
    %2019 = vmatpush1.msra.mxu0 0.0
    %2020 = vmatprep.subr.mxu0 0.0
    %2021 = vmatpush1.msra.mxu0 0.0
    %2022 = vmatprep.subr.mxu0 0.0
    %2023 = vmatpush1.msra.mxu0 0.0
    %2024 = vmatprep.subr.mxu0 0.0
    %2025 = vmatpush1.msra.mxu0 0.0
    %2026 = vmatprep.subr.mxu0 0.0
    %2027 = vmatpush1.msra.mxu0 0.0
    %2028 = vmatprep.subr.mxu0 0.0
    %2029 = vmatpush1.msra.mxu0 0.0
    %2030 = vmatprep.subr.mxu0 0.0
    %2031 = vmatpush1.msra.mxu0 0.0
    %2032 = vmatprep.subr.mxu0 0.0
    %2033 = vmatpush1.msra.mxu0 0.0
    %2034 = vmatprep.subr.mxu0 0.0
    %2035 = vmatpush1.msra.mxu0 0.0
    %2036 = vmatprep.subr.mxu0 0.0
    %2037 = vmatpush1.msra.mxu0 0.0
    %2038 = vmatprep.subr.mxu0 0.0
    %2039 = vmatpush1.msra.mxu0 0.0
    %2040 = vmatprep.subr.mxu0 0.0
    %2041 = vmatpush1.msra.mxu0 0.0
    %2042 = vmatprep.subr.mxu0 0.0
    %2043 = vmatpush1.msra.mxu0 %v1993
    %2044 = vmatprep.subr.mxu0 0.0
    %2045 = vmatpush1.msra.mxu0 %v1992
    %2046 = vmatprep.subr.mxu0 0.0
    %2047 = vmatpush1.msra.mxu0 %v1991
    %2048 = vmatprep.subr.mxu0 0.0
    %2049 = vmatpush1.msra.mxu0 %v1990
    %2050 = vmatprep.subr.mxu0 0.0
    %2051 = vmatpush2.msra.mxu0 0.0
    %2052 = vmatprep.subr.mxu0 0.0
    %2053 = vmatpush2.msra.mxu0 0.0
    %2054 = vmatprep.subr.mxu0 0.0
    %2055 = vmatpush2.msra.mxu0 0.0
    %2056 = vmatprep.subr.mxu0 0.0
    %2057 = vmatpush2.msra.mxu0 0.0
    %2058 = vmatprep.subr.mxu0 0.0
    %2059 = vmatpush2.msra.mxu0 0.0
    %2060 = vmatprep.subr.mxu0 0.0
    %2061 = vmatpush2.msra.mxu0 0.0
    %2062 = vmatprep.subr.mxu0 0.0
    %2063 = vmatpush2.msra.mxu0 0.0
    %2064 = vmatprep.subr.mxu0 0.0
    %2065 = vmatpush2.msra.mxu0 0.0
    %2066 = vmatprep.subr.mxu0 0.0
    %2067 = vmatpush2.msra.mxu0 0.0
    %2068 = vmatprep.subr.mxu0 0.0
    %2069 = vmatpush2.msra.mxu0 0.0
    %2070 = vmatprep.subr.mxu0 0.0
    %2071 = vmatpush2.msra.mxu0 0.0
    %2072 = vmatprep.subr.mxu0 0.0
    %2073 = vmatpush2.msra.mxu0 0.0
    %2074 = vmatprep.subr.mxu0 0.0
    %2075 = vmatpush2.msra.mxu0 0.0
    %2076 = vmatprep.subr.mxu0 0.0
    %2077 = vmatpush2.msra.mxu0 0.0
    %2078 = vmatprep.subr.mxu0 0.0
    %2079 = vmatpush2.msra.mxu0 0.0
    %2080 = vmatprep.subr.mxu0 0.0
    %2081 = vmatpush2.msra.mxu0 0.0
    %2082 = vmatprep.mubr.f32.mxu0 0.0
    %2083 = vmatmul.mubr.f32.gmra.mxu0 %v1995
    %v2084 = vpop.f32.mrf.mxu0
    %v2085 = vadd.f32 0.0, %v2084
    %v2086 = vpop.f32.mrf.mxu0
    %2087 = vmatprep.mubr.f32.mxu0 0.0
    %2088 = vmatmul.mubr.f32.gmra.mxu0 %v1998
    %v2089 = vpop.f32.mrf.mxu0
    %v2090 = vadd.f32 0.0, %v2089
    %v2091 = vpop.f32.mrf.mxu0
    %2092 = vmatprep.mubr.f32.mxu0 0.0
    %2093 = vmatmul.mubr.f32.gmra.mxu0 %v2001
    %v2094 = vpop.f32.mrf.mxu0
    %v2095 = vadd.f32 0.0, %v2094
    %v2096 = vpop.f32.mrf.mxu0
    %2097 = vmatprep.mubr.f32.mxu0 0.0
    %2098 = vmatmul.mubr.f32.gmra.mxu0 %v2004
    %v2099 = vpop.f32.mrf.mxu0
    %v2100 = vadd.f32 0.0, %v2099
    %v2101 = vpop.f32.mrf.mxu0
    %2102 = vmatprep.mubr.f32.mxu0 0.0
    %2103 = vmatmul.mubr.f32.gmra.mxu0 %v2007
    %v2104 = vpop.f32.mrf.mxu0
    %v2105 = vadd.f32 0.0, %v2104
    %v2106 = vpop.f32.mrf.mxu0
    %2107 = vmatprep.mubr.f32.mxu0 0.0
    %2108 = vmatmul.mubr.f32.gmra.mxu0 %v2010
    %v2109 = vpop.f32.mrf.mxu0
    %v2110 = vadd.f32 0.0, %v2109
    %v2111 = vpop.f32.mrf.mxu0
    %2112 = vmatprep.mubr.f32.mxu0 0.0
    %2113 = vmatmul.mubr.f32.gmra.mxu0 %v2013
    %v2114 = vpop.f32.mrf.mxu0
    %v2115 = vadd.f32 0.0, %v2114
    %v2116 = vpop.f32.mrf.mxu0
    %2117 = vmatprep.mubr.f32.mxu0 0.0
    %2118 = vmatmul.mubr.f32.gmra.mxu0 %v2016
    %v2119 = vpop.f32.mrf.mxu0
    %v2120 = vadd.f32 0.0, %v2119
    %v2121 = vpop.f32.mrf.mxu0
    %2122 = vdwg.mxu0
    %v2124 = vsel %vm140, %v1970, 0
    %v2127 = vsel %vm140, %v1971, 0
    %v2130 = vsel %vm140, %v1972, 0
    %v2133 = vsel %vm140, %v1973, 0
    %v2136 = vsel %vm140, %v1974, 0
    %v2139 = vsel %vm140, %v1975, 0
    %v2142 = vsel %vm140, %v1976, 0
    %v2145 = vsel %vm140, %v1977, 0
    %2147 = vmatprep.subr.mxu0 0.0
    %2148 = vmatpush1.msra.mxu0 0.0
    %2149 = vmatprep.subr.mxu0 0.0
    %2150 = vmatpush1.msra.mxu0 0.0
    %2151 = vmatprep.subr.mxu0 0.0
    %2152 = vmatpush1.msra.mxu0 0.0
    %2153 = vmatprep.subr.mxu0 0.0
    %2154 = vmatpush1.msra.mxu0 0.0
    %2155 = vmatprep.subr.mxu0 0.0
    %2156 = vmatpush1.msra.mxu0 0.0
    %2157 = vmatprep.subr.mxu0 0.0
    %2158 = vmatpush1.msra.mxu0 0.0
    %2159 = vmatprep.subr.mxu0 0.0
    %2160 = vmatpush1.msra.mxu0 0.0
    %2161 = vmatprep.subr.mxu0 0.0
    %2162 = vmatpush1.msra.mxu0 0.0
    %2163 = vmatprep.subr.mxu0 0.0
    %2164 = vmatpush1.msra.mxu0 0.0
    %2165 = vmatprep.subr.mxu0 0.0
    %2166 = vmatpush1.msra.mxu0 0.0
    %2167 = vmatprep.subr.mxu0 0.0
    %2168 = vmatpush1.msra.mxu0 0.0
    %2169 = vmatprep.subr.mxu0 0.0
    %2170 = vmatpush1.msra.mxu0 0.0
    %2171 = vmatprep.subr.mxu0 0.0
    %2172 = vmatpush1.msra.mxu0 %v1989
    %2173 = vmatprep.subr.mxu0 0.0
    %2174 = vmatpush1.msra.mxu0 %v1988
    %2175 = vmatprep.subr.mxu0 0.0
    %2176 = vmatpush1.msra.mxu0 %v1987
    %2177 = vmatprep.subr.mxu0 0.0
    %2178 = vmatpush1.msra.mxu0 %v1986
    %2179 = vmatprep.subr.mxu0 0.0
    %2180 = vmatpush2.msra.mxu0 0.0
    %2181 = vmatprep.subr.mxu0 0.0
    %2182 = vmatpush2.msra.mxu0 0.0
    %2183 = vmatprep.subr.mxu0 0.0
    %2184 = vmatpush2.msra.mxu0 0.0
    %2185 = vmatprep.subr.mxu0 0.0
    %2186 = vmatpush2.msra.mxu0 0.0
    %2187 = vmatprep.subr.mxu0 0.0
    %2188 = vmatpush2.msra.mxu0 0.0
    %2189 = vmatprep.subr.mxu0 0.0
    %2190 = vmatpush2.msra.mxu0 0.0
    %2191 = vmatprep.subr.mxu0 0.0
    %2192 = vmatpush2.msra.mxu0 0.0
    %2193 = vmatprep.subr.mxu0 0.0
    %2194 = vmatpush2.msra.mxu0 0.0
    %2195 = vmatprep.subr.mxu0 0.0
    %2196 = vmatpush2.msra.mxu0 0.0
    %2197 = vmatprep.subr.mxu0 0.0
    %2198 = vmatpush2.msra.mxu0 0.0
    %2199 = vmatprep.subr.mxu0 0.0
    %2200 = vmatpush2.msra.mxu0 0.0
    %2201 = vmatprep.subr.mxu0 0.0
    %2202 = vmatpush2.msra.mxu0 0.0
    %2203 = vmatprep.subr.mxu0 0.0
    %2204 = vmatpush2.msra.mxu0 0.0
    %2205 = vmatprep.subr.mxu0 0.0
    %2206 = vmatpush2.msra.mxu0 0.0
    %2207 = vmatprep.subr.mxu0 0.0
    %2208 = vmatpush2.msra.mxu0 0.0
    %2209 = vmatprep.subr.mxu0 0.0
    %2210 = vmatpush2.msra.mxu0 0.0
    %2211 = vmatprep.mubr.f32.mxu0 0.0
    %2212 = vmatmul.mubr.f32.gmra.mxu0 %v2124
    %v2213 = vpop.f32.mrf.mxu0
    %v2214 = vadd.f32 %v2085, %v2213
    %v2215 = vpop.f32.mrf.mxu0
    %2216 = vmatprep.mubr.f32.mxu0 0.0
    %2217 = vmatmul.mubr.f32.gmra.mxu0 %v2127
    %v2218 = vpop.f32.mrf.mxu0
    %v2219 = vadd.f32 %v2090, %v2218
    %v2220 = vpop.f32.mrf.mxu0
    %2221 = vmatprep.mubr.f32.mxu0 0.0
    %2222 = vmatmul.mubr.f32.gmra.mxu0 %v2130
    %v2223 = vpop.f32.mrf.mxu0
    %v2224 = vadd.f32 %v2095, %v2223
    %v2225 = vpop.f32.mrf.mxu0
    %2226 = vmatprep.mubr.f32.mxu0 0.0
    %2227 = vmatmul.mubr.f32.gmra.mxu0 %v2133
    %v2228 = vpop.f32.mrf.mxu0
    %v2229 = vadd.f32 %v2100, %v2228
    %v2230 = vpop.f32.mrf.mxu0
    %2231 = vmatprep.mubr.f32.mxu0 0.0
    %2232 = vmatmul.mubr.f32.gmra.mxu0 %v2136
    %v2233 = vpop.f32.mrf.mxu0
    %v2234 = vadd.f32 %v2105, %v2233
    %v2235 = vpop.f32.mrf.mxu0
    %2236 = vmatprep.mubr.f32.mxu0 0.0
    %2237 = vmatmul.mubr.f32.gmra.mxu0 %v2139
    %v2238 = vpop.f32.mrf.mxu0
    %v2239 = vadd.f32 %v2110, %v2238
    %v2240 = vpop.f32.mrf.mxu0
    %2241 = vmatprep.mubr.f32.mxu0 0.0
    %2242 = vmatmul.mubr.f32.gmra.mxu0 %v2142
    %v2243 = vpop.f32.mrf.mxu0
    %v2244 = vadd.f32 %v2115, %v2243
    %v2245 = vpop.f32.mrf.mxu0
    %2246 = vmatprep.mubr.f32.mxu0 0.0
    %2247 = vmatmul.mubr.f32.gmra.mxu0 %v2145
    %v2248 = vpop.f32.mrf.mxu0
    %v2249 = vadd.f32 %v2120, %v2248
    %v2250 = vpop.f32.mrf.mxu0
    %2251 = vdwg.mxu0
    %v2252 = vld [vmem:[%s7] sm:$0x1]
    %v2254 = vlaneseq
    %v2255 = vshrl.u32 %v2254, 7
    %v2256 = vsub.s32 0, %v2255
    %v2257 = vrot.slane %v2252, %v2256
    %v2259 = vadd.f32 %v2214, %v2257
    %v2260 = vadd.f32 %v2219, %v2257
    %v2261 = vadd.f32 %v2224, %v2257
    %v2262 = vadd.f32 %v2229, %v2257
    %v2263 = vadd.f32 %v2234, %v2257
    %v2264 = vadd.f32 %v2239, %v2257
    %v2265 = vadd.f32 %v2244, %v2257
    %v2266 = vadd.f32 %v2249, %v2257
    %2267 = vst [vmem:[#allocation16] sm:$0xff] %v2259
    %2268 = vst [vmem:[#allocation16 + $0x8] sm:$0xff] %v2260
    %2269 = vst [vmem:[#allocation16 + $0x10] sm:$0xff] %v2261
    %2270 = vst [vmem:[#allocation16 + $0x18] sm:$0xff] %v2262
    %2271 = vst [vmem:[#allocation16 + $0x20] sm:$0xff] %v2263
    %2272 = vst [vmem:[#allocation16 + $0x28] sm:$0xff] %v2264
    %2273 = vst [vmem:[#allocation16 + $0x30] sm:$0xff] %v2265
    %2274 = vst [vmem:[#allocation16 + $0x38] sm:$0xff] %v2266
    // Predicated region
    $region58: #{tpu_custom_call.1} parent=1 // pred_check
      _
    $region59: #{tpu_custom_call.1} parent=1 // pred_check_branch
      %2276 = sbr.rel (0) target = $region61
    $region60: #{tpu_custom_call.1} parent=1 // pred_region
      %s2278 = ssub.s32 1024, 1024
      %2279 = vsyncadd [#allocation7], %s2278
      %s2280 = sshll.u32 [#allocation16], 4
      %s2281 = int_to_ptr.vmem [resolvable:$true] %s2280
      %2286 = dma.vmem_to_hbm [thread:$0]  %s2281, 1024, %s8, [#allocation7], 128, 128, 8
    $region61: #{tpu_custom_call.1} parent=1 // pred_fallthru
      _
    // Predicated region
    $region62: #{tpu_custom_call.1} parent=1 // pred_check
      _
    $region63: #{tpu_custom_call.1} parent=1 // pred_check_branch
      %2288 = sbr.rel (0) target = $region65
    $region64: #{tpu_custom_call.1} parent=1 // pred_region
      %2289 = dma.done [#allocation7], 1024
    $region65: #{tpu_custom_call.1} parent=1 // pred_fallthru
      _
    %2290 = vsyncpa [#allocation6], 1
    %2291 = vsyncpa [#allocation9], 1
    %2292 = vsyncpa [#allocation12], 1
    %2293 = vsyncpa [#allocation15], 1
    %2294 = vsyncpa [#allocation7], 1

</llo_original>
